<compile_context>
chip_gen: v7x
topology: tpu7x:2x2x1
jax: 0.10.0
libtpu: 0.0.40
codegen_flags: <defaults>
</compile_context>

<pallas_src>
import functools

import jax
import jax.numpy as jnp
from jax import lax
from jax.experimental import pallas as pl
from jax.experimental.pallas import tpu as pltpu


def decoder_lstm_kernel(gx_ref, w_hh_ref, h0_ref, c0_ref, w_fc_ref, b_fc_ref,
                        out_ref, hc_ref, h_s, c_s, *, latent_size):
    L = latent_size
    Ts, Tb, _ = gx_ref.shape
    V = out_ref.shape[-1]
    s = pl.program_id(1)

    # (Re-)initialize carried LSTM state from z at the first sequence chunk of
    # every batch tile (grid iterates the "arbitrary" seq axis fastest).
    @pl.when(s == 0)
    def _():
        h_s[...] = h0_ref[...]
        c_s[...] = c0_ref[...]

    # Hoisted loop invariants: bf16 weights for the MXU, broadcasted fc bias.
    w_hh = w_hh_ref[...]                                   # (L, 4L) bf16, [i,f,o,g]
    w_fc = w_fc_ref[...]                                   # (L, V)  bf16
    b_fc = jnp.broadcast_to(b_fc_ref[...], (Tb, V))        # (Tb, V) f32

    def step(t, carry):
        h = h_s[...]                                       # (Tb, L) f32
        c = c_s[...]
        # Only the recurrent matmul sits on the serial critical path.
        gates = gx_ref[t] + jnp.dot(h.astype(jnp.bfloat16), w_hh,
                                    preferred_element_type=jnp.float32)   # (Tb, 4L)
        ifo = jax.nn.sigmoid(gates[:, :3 * L])             # one EUP pass: i, f, o
        g = jnp.tanh(gates[:, 3 * L:])                     # one EUP pass: g
        i_g = ifo[:, :L]
        f_g = ifo[:, L:2 * L]
        o_g = ifo[:, 2 * L:]
        c_new = f_g * c + i_g * g
        h_new = o_g * jnp.tanh(c_new)
        h_s[...] = h_new
        c_s[...] = c_new
        # fc projection: not on the h/c dependence chain -> overlapped by the
        # unrolled scheduler with the next step's recurrence matmul.
        out_ref[t] = (jnp.dot(h_new.astype(jnp.bfloat16), w_fc,
                              preferred_element_type=jnp.float32) + b_fc)
        return carry

    lax.fori_loop(0, Ts, step, 0, unroll=True)

    # Final hidden/cell concat, written once at the last sequence chunk.
    @pl.when(s == pl.num_programs(1) - 1)
    def _():
        hc_ref[:, :L] = h_s[...]
        hc_ref[:, L:] = c_s[...]


def init_params(key, vocab_size, embed_size, latent_size):
    ks = jax.random.split(key, 7)
    s_lstm = 1.0 / jnp.sqrt(latent_size)
    u = lambda k, shape, s: jax.random.uniform(k, shape, jnp.float32, -s, s)
    return dict(
        embedding=jax.random.normal(ks[0], (vocab_size, embed_size), jnp.float32),
        # PyTorch nn.LSTM(E, latent): gate order [i, f, g, o] along rows.
        w_ih=u(ks[1], (4 * latent_size, embed_size), s_lstm),
        w_hh=u(ks[2], (4 * latent_size, latent_size), s_lstm),
        b_ih=u(ks[3], (4 * latent_size,), s_lstm),
        b_hh=u(ks[4], (4 * latent_size,), s_lstm),
        # nn.Linear(latent, vocab)
        w_fc=u(ks[5], (vocab_size, latent_size), s_lstm),
        b_fc=u(ks[6], (vocab_size,), s_lstm),
    )


def decoder_lstm_forward(tokens, z, params, *, latent_size,
                         batch_tile=None, seq_tile=None):
    B, S = tokens.shape
    L = latent_size
    V = params["w_fc"].shape[0]

    Tb = batch_tile if batch_tile is not None else B
    Ts = seq_tile if seq_tile is not None else S
    assert B % Tb == 0 and S % Ts == 0
    assert Tb == B or Tb % 8 == 0, "batch tile must be a multiple of 8 or the full batch"

    # z: (num_layers=1, B, 2L) -> initial hidden / cell state.
    h0 = z[0, :, :L].astype(jnp.float32)                            # (B, L)
    c0 = z[0, :, L:].astype(jnp.float32)                            # (B, L)

    # ---- plain-JAX glue: embedding gather, gate reorder, big input projection ----
    emb = jnp.take(params["embedding"], tokens, axis=0)             # (B, S, E)
    emb_tm = jnp.transpose(emb, (1, 0, 2)).astype(jnp.float32)      # (S, B, E)

    def reorder_gates(a):      # rows grouped [i, f, g, o] -> [i, f, o, g]
        i, f, g, o = jnp.split(a, 4, axis=0)
        return jnp.concatenate([i, f, o, g], axis=0)

    w_ih_r = reorder_gates(params["w_ih"])                          # (4L, E)
    w_hh_r = reorder_gates(params["w_hh"])                          # (4L, L)
    b_r = reorder_gates(params["b_ih"] + params["b_hh"])            # (4L,)

    # Input projection for ALL timesteps as one batched matmul + fused bias.
    gates_x = (jnp.einsum("sbe,fe->sbf", emb_tm, w_ih_r.astype(jnp.float32))
               + b_r[None, None, :]).astype(jnp.float32)            # (S, B, 4L)

    w_hh_t = w_hh_r.T.astype(jnp.bfloat16)                          # (L, 4L)
    w_fc_t = params["w_fc"].T.astype(jnp.bfloat16)                  # (L, V)
    b_fc = params["b_fc"][None, :].astype(jnp.float32)              # (1, V)

    kernel = functools.partial(decoder_lstm_kernel, latent_size=L)

    out_seq, hc = pl.pallas_call(
        kernel,
        out_shape=(
            jax.ShapeDtypeStruct((S, B, V), jnp.float32),           # fc(lstm_out), time-major
            jax.ShapeDtypeStruct((B, 2 * L), jnp.float32),          # concat(h_T, c_T)
        ),
        grid_spec=pltpu.PrefetchScalarGridSpec(
            num_scalar_prefetch=0,
            grid=(B // Tb, S // Ts),
            in_specs=[
                pl.BlockSpec((Ts, Tb, 4 * L), lambda b, s: (s, b, 0)),   # gates_x chunk
                pl.BlockSpec((L, 4 * L), lambda b, s: (0, 0)),           # w_hh (resident)
                pl.BlockSpec((Tb, L), lambda b, s: (b, 0)),              # h0
                pl.BlockSpec((Tb, L), lambda b, s: (b, 0)),              # c0
                pl.BlockSpec((L, V), lambda b, s: (0, 0)),               # w_fc (resident)
                pl.BlockSpec((1, V), lambda b, s: (0, 0)),               # b_fc (resident)
            ],
            out_specs=[
                pl.BlockSpec((Ts, Tb, V), lambda b, s: (s, b, 0)),       # logits chunk
                pl.BlockSpec((Tb, 2 * L), lambda b, s: (b, 0)),          # hidden_cell
            ],
            scratch_shapes=[
                pltpu.VMEM((Tb, L), jnp.float32),   # h state, carried across seq chunks
                pltpu.VMEM((Tb, L), jnp.float32),   # c state
            ],
        ),
        compiler_params=pltpu.CompilerParams(
            dimension_semantics=("parallel", "arbitrary")),
    )(gates_x, w_hh_t, h0, c0, w_fc_t, b_fc)

    # LayerNorm default (layer_norm=False) -> Identity; Dropout -> identity at inference.
    # TODO(synk): train-mode dropout and the optional LayerNorm(latent) branch are not
    # implemented; module defaults make both identity in this forward pass.
    out = jnp.transpose(out_seq, (1, 0, 2)).reshape(B, S * V)       # fc(out).reshape(B, -1)
    hidden_cell = hc[None, :, :]                                    # (1, B, 2L)
    return out, hidden_cell


def _reference_forward(tokens, z, params, *, latent_size):
    """Pure-JAX reference matching PyTorch DecoderLstm semantics (eval mode)."""
    L = latent_size
    emb = jnp.take(params["embedding"], tokens, axis=0)             # (B, S, E)
    B = emb.shape[0]
    h0 = z[0, :, :L]
    c0 = z[0, :, L:]

    def step(carry, x_t):
        h, c = carry
        gates = (x_t @ params["w_ih"].T + params["b_ih"]
                 + h @ params["w_hh"].T + params["b_hh"])
        i_g = jax.nn.sigmoid(gates[:, 0 * L:1 * L])
        f_g = jax.nn.sigmoid(gates[:, 1 * L:2 * L])
        g_g = jnp.tanh(gates[:, 2 * L:3 * L])
        o_g = jax.nn.sigmoid(gates[:, 3 * L:4 * L])
        c_new = f_g * c + i_g * g_g
        h_new = o_g * jnp.tanh(c_new)
        return (h_new, c_new), h_new

    (h, c), outs = lax.scan(step, (h0, c0), jnp.transpose(emb, (1, 0, 2)))
    lstm_out = jnp.transpose(outs, (1, 0, 2))                       # (B, S, L)
    logits = lstm_out @ params["w_fc"].T + params["b_fc"]           # (B, S, V)
    out = logits.reshape(B, -1)
    hidden_cell = jnp.concatenate([h, c], axis=-1)[None]            # (1, B, 2L)
    return out, hidden_cell


if __name__ == "__main__":
    vocab_size, embed_size, hidden_size, latent_size = 24, 16, 32, 16
    batch, seq = 16, 8          # batch split into 2 "parallel" tiles, seq into 2 chunks

    key = jax.random.PRNGKey(0)
    k_params, k_tokens, k_z = jax.random.split(key, 3)
    params = init_params(k_params, vocab_size, embed_size, latent_size)
    tokens = jax.random.randint(k_tokens, (batch, seq), 0, vocab_size, jnp.int32)
    z = jax.random.normal(k_z, (1, batch, 2 * latent_size), jnp.float32)

    out, hidden_cell = decoder_lstm_forward(
        tokens, z, params, latent_size=latent_size, batch_tile=8, seq_tile=4)
    jax.block_until_ready((out, hidden_cell))

    assert out.shape == (batch, seq * vocab_size)
    assert hidden_cell.shape == (1, batch, 2 * latent_size)

    ref_out, ref_hc = _reference_forward(tokens, z, params, latent_size=latent_size)
    err_out = float(jnp.max(jnp.abs(out - ref_out)))
    err_hc = float(jnp.max(jnp.abs(hidden_cell - ref_hc)))
    assert err_out < 2e-2, f"out max abs err {err_out}"
    assert err_hc < 2e-2, f"hidden_cell max abs err {err_hc}"

    print("KERNEL_OK")
</pallas_src>

<mosaic_0001>
module attributes {stable_mosaic.version = 11 : i64} {
  func.func @decoder_lstm_kernel(%arg0: i32, %arg1: i32, %arg2: memref<4x8x64xf32, #tpu.memory_space<vmem>>, %arg3: memref<16x64xbf16, #tpu.memory_space<vmem>>, %arg4: memref<8x16xf32, #tpu.memory_space<vmem>>, %arg5: memref<8x16xf32, #tpu.memory_space<vmem>>, %arg6: memref<16x24xbf16, #tpu.memory_space<vmem>>, %arg7: memref<1x24xf32, #tpu.memory_space<vmem>>, %arg8: memref<4x8x24xf32, #tpu.memory_space<vmem>>, %arg9: memref<8x32xf32, #tpu.memory_space<vmem>>, %arg10: memref<8x16xf32, #tpu.memory_space<vmem>>, %arg11: memref<8x16xf32, #tpu.memory_space<vmem>>) attributes {dimension_semantics = [#tpu.dimension_semantics<parallel>, #tpu.dimension_semantics<arbitrary>], iteration_bounds = array<i64: 2, 2>, scalar_prefetch = 0 : i64, scratch_operands = 2 : i64, tpu.core_type = #tpu.core_type<tc>, window_params = [{transform_indices = @transform_0, window_bounds = array<i64: 4, 8, 64>}, {pipeline_mode = #tpu.pipeline_mode<synchronous>, transform_indices = @transform_1, window_bounds = array<i64: 16, 64>}, {transform_indices = @transform_2, window_bounds = array<i64: 8, 16>}, {transform_indices = @transform_3, window_bounds = array<i64: 8, 16>}, {pipeline_mode = #tpu.pipeline_mode<synchronous>, transform_indices = @transform_4, window_bounds = array<i64: 16, 24>}, {pipeline_mode = #tpu.pipeline_mode<synchronous>, transform_indices = @transform_5, window_bounds = array<i64: 1, 24>}, {transform_indices = @transform_6, window_bounds = array<i64: 4, 8, 24>}, {transform_indices = @transform_7, window_bounds = array<i64: 8, 32>}]} {
    %c0_i32 = arith.constant 0 : i32
    %0 = arith.cmpi eq, %arg1, %c0_i32 : i32
    %1 = arith.extui %0 : i1 to i32
    %c0_i32_0 = arith.constant 0 : i32
    %2 = arith.cmpi ne, %1, %c0_i32_0 : i32
    scf.if %2 {
      %c0_68 = arith.constant 0 : index
      %c0_69 = arith.constant 0 : index
      %143 = vector.load %arg4[%c0_68, %c0_69] : memref<8x16xf32, #tpu.memory_space<vmem>>, vector<8x16xf32>
      %c0_70 = arith.constant 0 : index
      %c0_71 = arith.constant 0 : index
      %144 = vector.load %arg10[%c0_70, %c0_71] : memref<8x16xf32, #tpu.memory_space<vmem>>, vector<8x16xf32>
      tpu.vector_store %arg10[%c0_70, %c0_71], %143 {strides = array<i32>} : memref<8x16xf32, #tpu.memory_space<vmem>>, vector<8x16xf32>,
      %c0_72 = arith.constant 0 : index
      %c0_73 = arith.constant 0 : index
      %145 = vector.load %arg5[%c0_72, %c0_73] : memref<8x16xf32, #tpu.memory_space<vmem>>, vector<8x16xf32>
      %c0_74 = arith.constant 0 : index
      %c0_75 = arith.constant 0 : index
      %146 = vector.load %arg11[%c0_74, %c0_75] : memref<8x16xf32, #tpu.memory_space<vmem>>, vector<8x16xf32>
      tpu.vector_store %arg11[%c0_74, %c0_75], %145 {strides = array<i32>} : memref<8x16xf32, #tpu.memory_space<vmem>>, vector<8x16xf32>,
    } else {
    }
    %c0 = arith.constant 0 : index
    %c0_1 = arith.constant 0 : index
    %3 = vector.load %arg3[%c0, %c0_1] : memref<16x64xbf16, #tpu.memory_space<vmem>>, vector<16x64xbf16>
    %c0_2 = arith.constant 0 : index
    %c0_3 = arith.constant 0 : index
    %4 = vector.load %arg6[%c0_2, %c0_3] : memref<16x24xbf16, #tpu.memory_space<vmem>>, vector<16x24xbf16>
    %c0_4 = arith.constant 0 : index
    %c0_5 = arith.constant 0 : index
    %5 = vector.load %arg7[%c0_4, %c0_5] : memref<1x24xf32, #tpu.memory_space<vmem>>, vector<1x24xf32>
    %6 = vector.shape_cast %5 : vector<1x24xf32> to vector<1x24xf32>
    %7 = vector.broadcast %6 : vector<1x24xf32> to vector<8x24xf32>
    %c0_i32_6 = arith.constant 0 : i32
    %c0_7 = arith.constant 0 : index
    %c0_8 = arith.constant 0 : index
    %8 = vector.load %arg10[%c0_7, %c0_8] : memref<8x16xf32, #tpu.memory_space<vmem>>, vector<8x16xf32>
    %c0_9 = arith.constant 0 : index
    %c0_10 = arith.constant 0 : index
    %9 = vector.load %arg11[%c0_9, %c0_10] : memref<8x16xf32, #tpu.memory_space<vmem>>, vector<8x16xf32>
    %10 = arith.index_cast %c0_i32_6 : i32 to index
    %c0_11 = arith.constant 0 : index
    %c0_12 = arith.constant 0 : index
    %11 = vector.load %arg2[%10, %c0_11, %c0_12] : memref<4x8x64xf32, #tpu.memory_space<vmem>>, vector<1x8x64xf32>
    %12 = vector.shape_cast %11 : vector<1x8x64xf32> to vector<8x64xf32>
    %13 = arith.truncf %8 : vector<8x16xf32> to vector<8x16xbf16>
    %cst = arith.constant dense<0.000000e+00> : vector<8x64xf32>
    %14 = tpu.matmul %13, %3, %cst {dimension_numbers = #tpu.dot_dimension_numbers<[1], [0], [0], [1], [0, 0, 1, 1], [], []>} : vector<8x16xbf16>, vector<16x64xbf16>, vector<8x64xf32> -> vector<8x64xf32>
    %15 = arith.addf %12, %14 : vector<8x64xf32>
    %16 = vector.extract_strided_slice %15 {offsets = [0, 0], sizes = [8, 48], strides = [1, 1]} : vector<8x64xf32> to vector<8x48xf32>
    %17 = arith.negf %16 : vector<8x48xf32>
    %18 = math.exp %17 : vector<8x48xf32>
    %cst_13 = arith.constant 1.000000e+00 : f32
    %19 = vector.broadcast %cst_13 : f32 to vector<8x48xf32>
    %20 = arith.addf %19, %18 : vector<8x48xf32>
    %21 = arith.divf %19, %20 : vector<8x48xf32>
    %22 = vector.extract_strided_slice %15 {offsets = [0, 48], sizes = [8, 16], strides = [1, 1]} : vector<8x64xf32> to vector<8x16xf32>
    %23 = math.tanh %22 : vector<8x16xf32>
    %24 = vector.extract_strided_slice %21 {offsets = [0, 0], sizes = [8, 16], strides = [1, 1]} : vector<8x48xf32> to vector<8x16xf32>
    %25 = vector.extract_strided_slice %21 {offsets = [0, 16], sizes = [8, 16], strides = [1, 1]} : vector<8x48xf32> to vector<8x16xf32>
    %26 = vector.extract_strided_slice %21 {offsets = [0, 32], sizes = [8, 16], strides = [1, 1]} : vector<8x48xf32> to vector<8x16xf32>
    %27 = arith.mulf %25, %9 : vector<8x16xf32>
    %28 = arith.mulf %24, %23 : vector<8x16xf32>
    %29 = arith.addf %27, %28 : vector<8x16xf32>
    %30 = math.tanh %29 : vector<8x16xf32>
    %31 = arith.mulf %26, %30 : vector<8x16xf32>
    %c0_14 = arith.constant 0 : index
    %c0_15 = arith.constant 0 : index
    %32 = vector.load %arg10[%c0_14, %c0_15] : memref<8x16xf32, #tpu.memory_space<vmem>>, vector<8x16xf32>
    tpu.vector_store %arg10[%c0_14, %c0_15], %31 {strides = array<i32>} : memref<8x16xf32, #tpu.memory_space<vmem>>, vector<8x16xf32>,
    %c0_16 = arith.constant 0 : index
    %c0_17 = arith.constant 0 : index
    %33 = vector.load %arg11[%c0_16, %c0_17] : memref<8x16xf32, #tpu.memory_space<vmem>>, vector<8x16xf32>
    tpu.vector_store %arg11[%c0_16, %c0_17], %29 {strides = array<i32>} : memref<8x16xf32, #tpu.memory_space<vmem>>, vector<8x16xf32>,
    %34 = arith.truncf %31 : vector<8x16xf32> to vector<8x16xbf16>
    %cst_18 = arith.constant dense<0.000000e+00> : vector<8x24xf32>
    %35 = tpu.matmul %34, %4, %cst_18 {dimension_numbers = #tpu.dot_dimension_numbers<[1], [0], [0], [1], [0, 0, 1, 1], [], []>} : vector<8x16xbf16>, vector<16x24xbf16>, vector<8x24xf32> -> vector<8x24xf32>
    %36 = arith.addf %35, %7 : vector<8x24xf32>
    %37 = arith.index_cast %c0_i32_6 : i32 to index
    %c0_19 = arith.constant 0 : index
    %c0_20 = arith.constant 0 : index
    %38 = vector.load %arg8[%37, %c0_19, %c0_20] : memref<4x8x24xf32, #tpu.memory_space<vmem>>, vector<1x8x24xf32>
    %39 = vector.shape_cast %38 : vector<1x8x24xf32> to vector<8x24xf32>
    %40 = vector.shape_cast %36 : vector<8x24xf32> to vector<1x8x24xf32>
    tpu.vector_store %arg8[%37, %c0_19, %c0_20], %40 {strides = array<i32>} : memref<4x8x24xf32, #tpu.memory_space<vmem>>, vector<1x8x24xf32>,
    %c1_i32 = arith.constant 1 : i32
    %c0_21 = arith.constant 0 : index
    %c0_22 = arith.constant 0 : index
    %41 = vector.load %arg10[%c0_21, %c0_22] : memref<8x16xf32, #tpu.memory_space<vmem>>, vector<8x16xf32>
    %c0_23 = arith.constant 0 : index
    %c0_24 = arith.constant 0 : index
    %42 = vector.load %arg11[%c0_23, %c0_24] : memref<8x16xf32, #tpu.memory_space<vmem>>, vector<8x16xf32>
    %43 = arith.index_cast %c1_i32 : i32 to index
    %c0_25 = arith.constant 0 : index
    %c0_26 = arith.constant 0 : index
    %44 = vector.load %arg2[%43, %c0_25, %c0_26] : memref<4x8x64xf32, #tpu.memory_space<vmem>>, vector<1x8x64xf32>
    %45 = vector.shape_cast %44 : vector<1x8x64xf32> to vector<8x64xf32>
    %46 = arith.truncf %41 : vector<8x16xf32> to vector<8x16xbf16>
    %cst_27 = arith.constant dense<0.000000e+00> : vector<8x64xf32>
    %47 = tpu.matmul %46, %3, %cst_27 {dimension_numbers = #tpu.dot_dimension_numbers<[1], [0], [0], [1], [0, 0, 1, 1], [], []>} : vector<8x16xbf16>, vector<16x64xbf16>, vector<8x64xf32> -> vector<8x64xf32>
    %48 = arith.addf %45, %47 : vector<8x64xf32>
    %49 = vector.extract_strided_slice %48 {offsets = [0, 0], sizes = [8, 48], strides = [1, 1]} : vector<8x64xf32> to vector<8x48xf32>
    %50 = arith.negf %49 : vector<8x48xf32>
    %51 = math.exp %50 : vector<8x48xf32>
    %cst_28 = arith.constant 1.000000e+00 : f32
    %52 = vector.broadcast %cst_28 : f32 to vector<8x48xf32>
    %53 = arith.addf %52, %51 : vector<8x48xf32>
    %54 = arith.divf %52, %53 : vector<8x48xf32>
    %55 = vector.extract_strided_slice %48 {offsets = [0, 48], sizes = [8, 16], strides = [1, 1]} : vector<8x64xf32> to vector<8x16xf32>
    %56 = math.tanh %55 : vector<8x16xf32>
    %57 = vector.extract_strided_slice %54 {offsets = [0, 0], sizes = [8, 16], strides = [1, 1]} : vector<8x48xf32> to vector<8x16xf32>
    %58 = vector.extract_strided_slice %54 {offsets = [0, 16], sizes = [8, 16], strides = [1, 1]} : vector<8x48xf32> to vector<8x16xf32>
    %59 = vector.extract_strided_slice %54 {offsets = [0, 32], sizes = [8, 16], strides = [1, 1]} : vector<8x48xf32> to vector<8x16xf32>
    %60 = arith.mulf %58, %42 : vector<8x16xf32>
    %61 = arith.mulf %57, %56 : vector<8x16xf32>
    %62 = arith.addf %60, %61 : vector<8x16xf32>
    %63 = math.tanh %62 : vector<8x16xf32>
    %64 = arith.mulf %59, %63 : vector<8x16xf32>
    %c0_29 = arith.constant 0 : index
    %c0_30 = arith.constant 0 : index
    %65 = vector.load %arg10[%c0_29, %c0_30] : memref<8x16xf32, #tpu.memory_space<vmem>>, vector<8x16xf32>
    tpu.vector_store %arg10[%c0_29, %c0_30], %64 {strides = array<i32>} : memref<8x16xf32, #tpu.memory_space<vmem>>, vector<8x16xf32>,
    %c0_31 = arith.constant 0 : index
    %c0_32 = arith.constant 0 : index
    %66 = vector.load %arg11[%c0_31, %c0_32] : memref<8x16xf32, #tpu.memory_space<vmem>>, vector<8x16xf32>
    tpu.vector_store %arg11[%c0_31, %c0_32], %62 {strides = array<i32>} : memref<8x16xf32, #tpu.memory_space<vmem>>, vector<8x16xf32>,
    %67 = arith.truncf %64 : vector<8x16xf32> to vector<8x16xbf16>
    %cst_33 = arith.constant dense<0.000000e+00> : vector<8x24xf32>
    %68 = tpu.matmul %67, %4, %cst_33 {dimension_numbers = #tpu.dot_dimension_numbers<[1], [0], [0], [1], [0, 0, 1, 1], [], []>} : vector<8x16xbf16>, vector<16x24xbf16>, vector<8x24xf32> -> vector<8x24xf32>
    %69 = arith.addf %68, %7 : vector<8x24xf32>
    %70 = arith.index_cast %c1_i32 : i32 to index
    %c0_34 = arith.constant 0 : index
    %c0_35 = arith.constant 0 : index
    %71 = vector.load %arg8[%70, %c0_34, %c0_35] : memref<4x8x24xf32, #tpu.memory_space<vmem>>, vector<1x8x24xf32>
    %72 = vector.shape_cast %71 : vector<1x8x24xf32> to vector<8x24xf32>
    %73 = vector.shape_cast %69 : vector<8x24xf32> to vector<1x8x24xf32>
    tpu.vector_store %arg8[%70, %c0_34, %c0_35], %73 {strides = array<i32>} : memref<4x8x24xf32, #tpu.memory_space<vmem>>, vector<1x8x24xf32>,
    %c2_i32 = arith.constant 2 : i32
    %c0_36 = arith.constant 0 : index
    %c0_37 = arith.constant 0 : index
    %74 = vector.load %arg10[%c0_36, %c0_37] : memref<8x16xf32, #tpu.memory_space<vmem>>, vector<8x16xf32>
    %c0_38 = arith.constant 0 : index
    %c0_39 = arith.constant 0 : index
    %75 = vector.load %arg11[%c0_38, %c0_39] : memref<8x16xf32, #tpu.memory_space<vmem>>, vector<8x16xf32>
    %76 = arith.index_cast %c2_i32 : i32 to index
    %c0_40 = arith.constant 0 : index
    %c0_41 = arith.constant 0 : index
    %77 = vector.load %arg2[%76, %c0_40, %c0_41] : memref<4x8x64xf32, #tpu.memory_space<vmem>>, vector<1x8x64xf32>
    %78 = vector.shape_cast %77 : vector<1x8x64xf32> to vector<8x64xf32>
    %79 = arith.truncf %74 : vector<8x16xf32> to vector<8x16xbf16>
    %cst_42 = arith.constant dense<0.000000e+00> : vector<8x64xf32>
    %80 = tpu.matmul %79, %3, %cst_42 {dimension_numbers = #tpu.dot_dimension_numbers<[1], [0], [0], [1], [0, 0, 1, 1], [], []>} : vector<8x16xbf16>, vector<16x64xbf16>, vector<8x64xf32> -> vector<8x64xf32>
    %81 = arith.addf %78, %80 : vector<8x64xf32>
    %82 = vector.extract_strided_slice %81 {offsets = [0, 0], sizes = [8, 48], strides = [1, 1]} : vector<8x64xf32> to vector<8x48xf32>
    %83 = arith.negf %82 : vector<8x48xf32>
    %84 = math.exp %83 : vector<8x48xf32>
    %cst_43 = arith.constant 1.000000e+00 : f32
    %85 = vector.broadcast %cst_43 : f32 to vector<8x48xf32>
    %86 = arith.addf %85, %84 : vector<8x48xf32>
    %87 = arith.divf %85, %86 : vector<8x48xf32>
    %88 = vector.extract_strided_slice %81 {offsets = [0, 48], sizes = [8, 16], strides = [1, 1]} : vector<8x64xf32> to vector<8x16xf32>
    %89 = math.tanh %88 : vector<8x16xf32>
    %90 = vector.extract_strided_slice %87 {offsets = [0, 0], sizes = [8, 16], strides = [1, 1]} : vector<8x48xf32> to vector<8x16xf32>
    %91 = vector.extract_strided_slice %87 {offsets = [0, 16], sizes = [8, 16], strides = [1, 1]} : vector<8x48xf32> to vector<8x16xf32>
    %92 = vector.extract_strided_slice %87 {offsets = [0, 32], sizes = [8, 16], strides = [1, 1]} : vector<8x48xf32> to vector<8x16xf32>
    %93 = arith.mulf %91, %75 : vector<8x16xf32>
    %94 = arith.mulf %90, %89 : vector<8x16xf32>
    %95 = arith.addf %93, %94 : vector<8x16xf32>
    %96 = math.tanh %95 : vector<8x16xf32>
    %97 = arith.mulf %92, %96 : vector<8x16xf32>
    %c0_44 = arith.constant 0 : index
    %c0_45 = arith.constant 0 : index
    %98 = vector.load %arg10[%c0_44, %c0_45] : memref<8x16xf32, #tpu.memory_space<vmem>>, vector<8x16xf32>
    tpu.vector_store %arg10[%c0_44, %c0_45], %97 {strides = array<i32>} : memref<8x16xf32, #tpu.memory_space<vmem>>, vector<8x16xf32>,
    %c0_46 = arith.constant 0 : index
    %c0_47 = arith.constant 0 : index
    %99 = vector.load %arg11[%c0_46, %c0_47] : memref<8x16xf32, #tpu.memory_space<vmem>>, vector<8x16xf32>
    tpu.vector_store %arg11[%c0_46, %c0_47], %95 {strides = array<i32>} : memref<8x16xf32, #tpu.memory_space<vmem>>, vector<8x16xf32>,
    %100 = arith.truncf %97 : vector<8x16xf32> to vector<8x16xbf16>
    %cst_48 = arith.constant dense<0.000000e+00> : vector<8x24xf32>
    %101 = tpu.matmul %100, %4, %cst_48 {dimension_numbers = #tpu.dot_dimension_numbers<[1], [0], [0], [1], [0, 0, 1, 1], [], []>} : vector<8x16xbf16>, vector<16x24xbf16>, vector<8x24xf32> -> vector<8x24xf32>
    %102 = arith.addf %101, %7 : vector<8x24xf32>
    %103 = arith.index_cast %c2_i32 : i32 to index
    %c0_49 = arith.constant 0 : index
    %c0_50 = arith.constant 0 : index
    %104 = vector.load %arg8[%103, %c0_49, %c0_50] : memref<4x8x24xf32, #tpu.memory_space<vmem>>, vector<1x8x24xf32>
    %105 = vector.shape_cast %104 : vector<1x8x24xf32> to vector<8x24xf32>
    %106 = vector.shape_cast %102 : vector<8x24xf32> to vector<1x8x24xf32>
    tpu.vector_store %arg8[%103, %c0_49, %c0_50], %106 {strides = array<i32>} : memref<4x8x24xf32, #tpu.memory_space<vmem>>, vector<1x8x24xf32>,
    %c3_i32 = arith.constant 3 : i32
    %c0_51 = arith.constant 0 : index
    %c0_52 = arith.constant 0 : index
    %107 = vector.load %arg10[%c0_51, %c0_52] : memref<8x16xf32, #tpu.memory_space<vmem>>, vector<8x16xf32>
    %c0_53 = arith.constant 0 : index
    %c0_54 = arith.constant 0 : index
    %108 = vector.load %arg11[%c0_53, %c0_54] : memref<8x16xf32, #tpu.memory_space<vmem>>, vector<8x16xf32>
    %109 = arith.index_cast %c3_i32 : i32 to index
    %c0_55 = arith.constant 0 : index
    %c0_56 = arith.constant 0 : index
    %110 = vector.load %arg2[%109, %c0_55, %c0_56] : memref<4x8x64xf32, #tpu.memory_space<vmem>>, vector<1x8x64xf32>
    %111 = vector.shape_cast %110 : vector<1x8x64xf32> to vector<8x64xf32>
    %112 = arith.truncf %107 : vector<8x16xf32> to vector<8x16xbf16>
    %cst_57 = arith.constant dense<0.000000e+00> : vector<8x64xf32>
    %113 = tpu.matmul %112, %3, %cst_57 {dimension_numbers = #tpu.dot_dimension_numbers<[1], [0], [0], [1], [0, 0, 1, 1], [], []>} : vector<8x16xbf16>, vector<16x64xbf16>, vector<8x64xf32> -> vector<8x64xf32>
    %114 = arith.addf %111, %113 : vector<8x64xf32>
    %115 = vector.extract_strided_slice %114 {offsets = [0, 0], sizes = [8, 48], strides = [1, 1]} : vector<8x64xf32> to vector<8x48xf32>
    %116 = arith.negf %115 : vector<8x48xf32>
    %117 = math.exp %116 : vector<8x48xf32>
    %cst_58 = arith.constant 1.000000e+00 : f32
    %118 = vector.broadcast %cst_58 : f32 to vector<8x48xf32>
    %119 = arith.addf %118, %117 : vector<8x48xf32>
    %120 = arith.divf %118, %119 : vector<8x48xf32>
    %121 = vector.extract_strided_slice %114 {offsets = [0, 48], sizes = [8, 16], strides = [1, 1]} : vector<8x64xf32> to vector<8x16xf32>
    %122 = math.tanh %121 : vector<8x16xf32>
    %123 = vector.extract_strided_slice %120 {offsets = [0, 0], sizes = [8, 16], strides = [1, 1]} : vector<8x48xf32> to vector<8x16xf32>
    %124 = vector.extract_strided_slice %120 {offsets = [0, 16], sizes = [8, 16], strides = [1, 1]} : vector<8x48xf32> to vector<8x16xf32>
    %125 = vector.extract_strided_slice %120 {offsets = [0, 32], sizes = [8, 16], strides = [1, 1]} : vector<8x48xf32> to vector<8x16xf32>
    %126 = arith.mulf %124, %108 : vector<8x16xf32>
    %127 = arith.mulf %123, %122 : vector<8x16xf32>
    %128 = arith.addf %126, %127 : vector<8x16xf32>
    %129 = math.tanh %128 : vector<8x16xf32>
    %130 = arith.mulf %125, %129 : vector<8x16xf32>
    %c0_59 = arith.constant 0 : index
    %c0_60 = arith.constant 0 : index
    %131 = vector.load %arg10[%c0_59, %c0_60] : memref<8x16xf32, #tpu.memory_space<vmem>>, vector<8x16xf32>
    tpu.vector_store %arg10[%c0_59, %c0_60], %130 {strides = array<i32>} : memref<8x16xf32, #tpu.memory_space<vmem>>, vector<8x16xf32>,
    %c0_61 = arith.constant 0 : index
    %c0_62 = arith.constant 0 : index
    %132 = vector.load %arg11[%c0_61, %c0_62] : memref<8x16xf32, #tpu.memory_space<vmem>>, vector<8x16xf32>
    tpu.vector_store %arg11[%c0_61, %c0_62], %128 {strides = array<i32>} : memref<8x16xf32, #tpu.memory_space<vmem>>, vector<8x16xf32>,
    %133 = arith.truncf %130 : vector<8x16xf32> to vector<8x16xbf16>
    %cst_63 = arith.constant dense<0.000000e+00> : vector<8x24xf32>
    %134 = tpu.matmul %133, %4, %cst_63 {dimension_numbers = #tpu.dot_dimension_numbers<[1], [0], [0], [1], [0, 0, 1, 1], [], []>} : vector<8x16xbf16>, vector<16x24xbf16>, vector<8x24xf32> -> vector<8x24xf32>
    %135 = arith.addf %134, %7 : vector<8x24xf32>
    %136 = arith.index_cast %c3_i32 : i32 to index
    %c0_64 = arith.constant 0 : index
    %c0_65 = arith.constant 0 : index
    %137 = vector.load %arg8[%136, %c0_64, %c0_65] : memref<4x8x24xf32, #tpu.memory_space<vmem>>, vector<1x8x24xf32>
    %138 = vector.shape_cast %137 : vector<1x8x24xf32> to vector<8x24xf32>
    %139 = vector.shape_cast %135 : vector<8x24xf32> to vector<1x8x24xf32>
    tpu.vector_store %arg8[%136, %c0_64, %c0_65], %139 {strides = array<i32>} : memref<4x8x24xf32, #tpu.memory_space<vmem>>, vector<1x8x24xf32>,
    %c4_i32 = arith.constant 4 : i32
    %c1_i32_66 = arith.constant 1 : i32
    %140 = arith.cmpi eq, %arg1, %c1_i32_66 : i32
    %141 = arith.extui %140 : i1 to i32
    %c0_i32_67 = arith.constant 0 : i32
    %142 = arith.cmpi ne, %141, %c0_i32_67 : i32
    scf.if %142 {
      %c0_68 = arith.constant 0 : index
      %c0_69 = arith.constant 0 : index
      %143 = vector.load %arg10[%c0_68, %c0_69] : memref<8x16xf32, #tpu.memory_space<vmem>>, vector<8x16xf32>
      %c0_70 = arith.constant 0 : index
      %c0_71 = arith.constant 0 : index
      %144 = vector.load %arg9[%c0_70, %c0_71] : memref<8x32xf32, #tpu.memory_space<vmem>>, vector<8x16xf32>
      tpu.vector_store %arg9[%c0_70, %c0_71], %143 {strides = array<i32>} : memref<8x32xf32, #tpu.memory_space<vmem>>, vector<8x16xf32>,
      %c0_72 = arith.constant 0 : index
      %c0_73 = arith.constant 0 : index
      %145 = vector.load %arg11[%c0_72, %c0_73] : memref<8x16xf32, #tpu.memory_space<vmem>>, vector<8x16xf32>
      %c0_74 = arith.constant 0 : index
      %c16 = arith.constant 16 : index
      %146 = vector.load %arg9[%c0_74, %c16] : memref<8x32xf32, #tpu.memory_space<vmem>>, vector<8x16xf32>
      tpu.vector_store %arg9[%c0_74, %c16], %145 {strides = array<i32>} : memref<8x32xf32, #tpu.memory_space<vmem>>, vector<8x16xf32>,
    } else {
    }
    return
  }
  func.func @transform_0(%arg0: i32, %arg1: i32) -> (i32, i32, i32) {
    %c0_i32 = arith.constant 0 : i32
    %c0_i32_0 = arith.constant 0 : i32
    return %arg1, %arg0, %c0_i32 : i32, i32, i32
  }
  func.func @transform_1(%arg0: i32, %arg1: i32) -> (i32, i32) {
    %c0_i32 = arith.constant 0 : i32
    %c0_i32_0 = arith.constant 0 : i32
    %c0_i32_1 = arith.constant 0 : i32
    return %c0_i32, %c0_i32_0 : i32, i32
  }
  func.func @transform_2(%arg0: i32, %arg1: i32) -> (i32, i32) {
    %c0_i32 = arith.constant 0 : i32
    %c0_i32_0 = arith.constant 0 : i32
    return %arg0, %c0_i32 : i32, i32
  }
  func.func @transform_3(%arg0: i32, %arg1: i32) -> (i32, i32) {
    %c0_i32 = arith.constant 0 : i32
    %c0_i32_0 = arith.constant 0 : i32
    return %arg0, %c0_i32 : i32, i32
  }
  func.func @transform_4(%arg0: i32, %arg1: i32) -> (i32, i32) {
    %c0_i32 = arith.constant 0 : i32
    %c0_i32_0 = arith.constant 0 : i32
    %c0_i32_1 = arith.constant 0 : i32
    return %c0_i32, %c0_i32_0 : i32, i32
  }
  func.func @transform_5(%arg0: i32, %arg1: i32) -> (i32, i32) {
    %c0_i32 = arith.constant 0 : i32
    %c0_i32_0 = arith.constant 0 : i32
    %c0_i32_1 = arith.constant 0 : i32
    return %c0_i32, %c0_i32_0 : i32, i32
  }
  func.func @transform_6(%arg0: i32, %arg1: i32) -> (i32, i32, i32) {
    %c0_i32 = arith.constant 0 : i32
    %c0_i32_0 = arith.constant 0 : i32
    return %arg1, %arg0, %c0_i32 : i32, i32, i32
  }
  func.func @transform_7(%arg0: i32, %arg1: i32) -> (i32, i32) {
    %c0_i32 = arith.constant 0 : i32
    %c0_i32_0 = arith.constant 0 : i32
    return %arg0, %c0_i32 : i32, i32
  }
}

</mosaic_0001>

<llo_original>
// kernel: tpu_custom_call.1
$region0: #{tpu_custom_call.1}
  #allocation0 [shape = 'u32[]', space=smem, size = 0x4, offset = 0x4, fixed_abs, tag = 'smem constant byte address 0x4 - core index']
  #allocation1 [shape = 'u32[144,128]{1,0:T(1,128)}', space=vmem, size = 0x12000, scoped, tag = 'internal scratch']
  #allocation2 [shape = 'f32[8,16]{1,0:T(8,128)}', space=vmem, size = 0x1000, scoped, tag = 'scratch operand']
  #allocation3 [shape = 'f32[8,16]{1,0:T(8,128)}', space=vmem, size = 0x1000, scoped, tag = 'scratch operand']
  %s0 = inlined_call_operand.hbm [shape: f32[8,16,64], index: 0, kind: input, shape index: {}]
  %s1 = inlined_call_operand.hbm [shape: bf16[16,64], index: 1, kind: input, shape index: {}]
  %s2 = inlined_call_operand.hbm [shape: f32[16,16], index: 2, kind: input, shape index: {}]
  %s3 = inlined_call_operand.hbm [shape: f32[16,16], index: 3, kind: input, shape index: {}]
  %s4 = inlined_call_operand.vmem [shape: bf16[16,24], index: 4, kind: input, shape index: {}]
  %s5 = inlined_call_operand.vmem [shape: f32[1,24], index: 5, kind: input, shape index: {}]
  %s6 = inlined_call_operand.hbm [shape: f32[8,16,24], index: 6, kind: output, shape index: {0}]
  %s7 = inlined_call_operand.hbm [shape: f32[16,32], index: 7, kind: output, shape index: {1}]
  %8 = xla_tuple %s6, %s7
  %s9 = sld [smem:[#allocation0]]
  $region89: #{tpu_custom_call.1} parent=0
    _
  %s11 = ssub.s32 1, %s9
  %s12 = scalar_select 0, %s11, %s9
  $region1: #{tpu_custom_call.1} parent=0
    #allocation4 [shape = 'u8[32768]{0}', space=vmem, size = 0x8000, scoped, tag = 'input window, operand 0']
    #allocation5 [shape = 's32[2]{0}', space=sflag, size = 0x8, scoped, tag = 'scoped memory for tpu_custom_call.1']
    #allocation6 [shape = 's32[2]{0}', space=sflag, size = 0x8, scoped, tag = 'scoped memory for tpu_custom_call.1']
    #allocation7 [shape = 'u8[4096]{0}', space=vmem, size = 0x1000, scoped, tag = 'input window, operand 1, single buffered']
    #allocation8 [shape = 's32[1]{0}', space=sflag, size = 0x4, scoped, tag = 'scoped memory for tpu_custom_call.1']
    #allocation9 [shape = 'u8[8192]{0}', space=vmem, size = 0x2000, scoped, tag = 'input window, operand 2']
    #allocation10 [shape = 'u8[8192]{0}', space=vmem, size = 0x2000, scoped, tag = 'input window, operand 3']
    #allocation11 [shape = 'u8[32768]{0}', space=vmem, size = 0x8000, scoped, tag = 'output window, operand 0']
    #allocation12 [shape = 'u8[8192]{0}', space=vmem, size = 0x2000, scoped, tag = 'output window, operand 1']
    #allocation13 [shape = 's32[2]{0}', space=sflag, size = 0x8, scoped, tag = 'scoped memory for tpu_custom_call.1']
    %13 = vsyncpa [#allocation5], 0
    %s14 = scalar_lea.sflag [#allocation5], 1
    %15 = vsyncpa %s14, 0
    %16 = vsyncpa [#allocation8], 0
    %17 = vsyncpa [#allocation6], 0
    %s18 = scalar_lea.sflag [#allocation6], 1
    %19 = vsyncpa %s18, 0
    %20 = vsyncpa [#allocation13], 0
    %s21 = scalar_lea.sflag [#allocation13], 1
    %22 = vsyncpa %s21, 0
    loop: start=0, step=1, limit=6
    $region2: #{tpu_custom_call.1} parent=1 // loop_pre_header
      _
    $region3: #{tpu_custom_call.1} parent=1 // loop_header
      %s24 = sphi 0, %s28
      %p25 = scmp.ge.s32.totalorder %s24, 6
      %s31 = sphi 0, %s43
      %s32 = sphi 0, %s39
      %s33 = sphi 0, %s31
      %s34 = sphi 0, %s32
      %s35 = sphi 0, %s33
      %s36 = sphi 0, %s34
      %s48 = sphi 0, %s50
      %s51 = sphi 0, %s48
      %s52 = sphi 0, %s51
      %s68 = sphi 0, %s52
      %s72 = sphi 0, %s72
      %s74 = sphi 0, %s72
      %s75 = sphi 0, %s74
      %s89 = sphi 0, %s75
      %s95 = sphi 0, %s97
      %s98 = sphi 0, %s95
      %s99 = sphi 0, %s98
      %s115 = sphi 0, %s99
      %s121 = sphi 0, %s123
      %s124 = sphi 0, %s121
      %s125 = sphi 0, %s124
      %s141 = sphi 0, %s125
      %s145 = sphi 0, %s145
      %s147 = sphi 0, %s145
      %s148 = sphi 0, %s147
      %s162 = sphi 0, %s148
      %s166 = sphi 0, %s166
      %s168 = sphi 0, %s166
      %s169 = sphi 0, %s168
      %s183 = sphi 0, %s169
      %s191 = sphi 0, %s193
      %s194 = sphi 0, %s191
      %s195 = sphi 0, %s194
      %s211 = sphi 0, %s195
      %s217 = sphi 0, %s219
      %s220 = sphi 0, %s217
      %s221 = sphi 0, %s220
      %s237 = sphi 0, %s221
    $region4: #{tpu_custom_call.1} parent=1 // loop_header_branch
      %27 = sbr.rel (%p25) target = $region8
    $region5: #{tpu_custom_call.1} parent=1 // loop_body
      %s29 = ssub.s32 %s24, 1
      %s30 = ssub.s32 %s24, 2
      %s37 = sadd.s32 1, %s32
      %p38 = scmp.ge.s32.totalorder %s37, 2
      %s39 = scalar_select %p38, 0, %s37
      %s40 = sadd.s32 1, %s31
      %s41 = scalar_select %p38, %s40, %s31
      %p42 = scmp.ge.s32.totalorder %s41, 2
      %s43 = scalar_select %p42, 0, %s41
      %s44 = ssub.s32 %s32, %s39
      %s45 = ssub.s32 %s31, %s43
      %s46 = sor.u32 %s44, %s45
      %p47 = scmp.eq.s32.totalorder %s46, 0
      %s49 = sadd.s32 %s48, 1
      %s50 = scalar_select %p47, %s48, %s49
      %p53 = pneg %p47
      %p54 = scmp.eq.s32.totalorder %s24, 3
      %p55 = por %p53, %p54
      %p56 = scmp.ne.s32.totalorder %s48, %s51
      %p57 = scmp.eq.s32.totalorder %s24, 0
      %p58 = por %p56, %p57
      %p59 = scmp.ne.s32.totalorder %s48, %s51
      %p60 = scmp.eq.s32.totalorder %s29, 3
      %p61 = por %p59, %p60
      %p62 = scmp.ne.s32.totalorder %s51, %s52
      %p63 = scmp.eq.s32.totalorder %s29, 0
      %p64 = por %p62, %p63
      %p65 = scmp.ne.s32.totalorder %s51, %s52
      %p66 = scmp.eq.s32.totalorder %s30, 3
      %p67 = por %p65, %p66
      %p69 = scmp.ne.s32.totalorder %s52, %s68
      %p70 = scmp.eq.s32.totalorder %s30, 0
      %p71 = por %p69, %p70
      %s73 = sadd.s32 %s72, 1
      %p76 = scmp.eq.s32.totalorder %s24, 3
      %p77 = scmp.ne.s32.totalorder %s72, %s74
      %p78 = scmp.eq.s32.totalorder %s24, 0
      %p79 = por %p77, %p78
      %p80 = scmp.ne.s32.totalorder %s72, %s74
      %p81 = scmp.eq.s32.totalorder %s29, 3
      %p82 = por %p80, %p81
      %p83 = scmp.ne.s32.totalorder %s74, %s75
      %p84 = scmp.eq.s32.totalorder %s29, 0
      %p85 = por %p83, %p84
      %p86 = scmp.ne.s32.totalorder %s74, %s75
      %p87 = scmp.eq.s32.totalorder %s30, 3
      %p88 = por %p86, %p87
      %p90 = scmp.ne.s32.totalorder %s75, %s89
      %p91 = scmp.eq.s32.totalorder %s30, 0
      %p92 = por %p90, %p91
      %s93 = ssub.s32 %s31, %s43
      %p94 = scmp.eq.s32.totalorder %s93, 0
      %s96 = sadd.s32 %s95, 1
      %s97 = scalar_select %p94, %s95, %s96
      %p100 = pneg %p94
      %p101 = scmp.eq.s32.totalorder %s24, 3
      %p102 = por %p100, %p101
      %p103 = scmp.ne.s32.totalorder %s95, %s98
      %p104 = scmp.eq.s32.totalorder %s24, 0
      %p105 = por %p103, %p104
      %p106 = scmp.ne.s32.totalorder %s95, %s98
      %p107 = scmp.eq.s32.totalorder %s29, 3
      %p108 = por %p106, %p107
      %p109 = scmp.ne.s32.totalorder %s98, %s99
      %p110 = scmp.eq.s32.totalorder %s29, 0
      %p111 = por %p109, %p110
      %p112 = scmp.ne.s32.totalorder %s98, %s99
      %p113 = scmp.eq.s32.totalorder %s30, 3
      %p114 = por %p112, %p113
      %p116 = scmp.ne.s32.totalorder %s99, %s115
      %p117 = scmp.eq.s32.totalorder %s30, 0
      %p118 = por %p116, %p117
      %s119 = ssub.s32 %s31, %s43
      %p120 = scmp.eq.s32.totalorder %s119, 0
      %s122 = sadd.s32 %s121, 1
      %s123 = scalar_select %p120, %s121, %s122
      %p126 = pneg %p120
      %p127 = scmp.eq.s32.totalorder %s24, 3
      %p128 = por %p126, %p127
      %p129 = scmp.ne.s32.totalorder %s121, %s124
      %p130 = scmp.eq.s32.totalorder %s24, 0
      %p131 = por %p129, %p130
      %p132 = scmp.ne.s32.totalorder %s121, %s124
      %p133 = scmp.eq.s32.totalorder %s29, 3
      %p134 = por %p132, %p133
      %p135 = scmp.ne.s32.totalorder %s124, %s125
      %p136 = scmp.eq.s32.totalorder %s29, 0
      %p137 = por %p135, %p136
      %p138 = scmp.ne.s32.totalorder %s124, %s125
      %p139 = scmp.eq.s32.totalorder %s30, 3
      %p140 = por %p138, %p139
      %p142 = scmp.ne.s32.totalorder %s125, %s141
      %p143 = scmp.eq.s32.totalorder %s30, 0
      %p144 = por %p142, %p143
      %s146 = sadd.s32 %s145, 1
      %p149 = scmp.eq.s32.totalorder %s24, 3
      %p150 = scmp.ne.s32.totalorder %s145, %s147
      %p151 = scmp.eq.s32.totalorder %s24, 0
      %p152 = por %p150, %p151
      %p153 = scmp.ne.s32.totalorder %s145, %s147
      %p154 = scmp.eq.s32.totalorder %s29, 3
      %p155 = por %p153, %p154
      %p156 = scmp.ne.s32.totalorder %s147, %s148
      %p157 = scmp.eq.s32.totalorder %s29, 0
      %p158 = por %p156, %p157
      %p159 = scmp.ne.s32.totalorder %s147, %s148
      %p160 = scmp.eq.s32.totalorder %s30, 3
      %p161 = por %p159, %p160
      %p163 = scmp.ne.s32.totalorder %s148, %s162
      %p164 = scmp.eq.s32.totalorder %s30, 0
      %p165 = por %p163, %p164
      %s167 = sadd.s32 %s166, 1
      %p170 = scmp.eq.s32.totalorder %s24, 3
      %p171 = scmp.ne.s32.totalorder %s166, %s168
      %p172 = scmp.eq.s32.totalorder %s24, 0
      %p173 = por %p171, %p172
      %p174 = scmp.ne.s32.totalorder %s166, %s168
      %p175 = scmp.eq.s32.totalorder %s29, 3
      %p176 = por %p174, %p175
      %p177 = scmp.ne.s32.totalorder %s168, %s169
      %p178 = scmp.eq.s32.totalorder %s29, 0
      %p179 = por %p177, %p178
      %p180 = scmp.ne.s32.totalorder %s168, %s169
      %p181 = scmp.eq.s32.totalorder %s30, 3
      %p182 = por %p180, %p181
      %p184 = scmp.ne.s32.totalorder %s169, %s183
      %p185 = scmp.eq.s32.totalorder %s30, 0
      %p186 = por %p184, %p185
      %s187 = ssub.s32 %s32, %s39
      %s188 = ssub.s32 %s31, %s43
      %s189 = sor.u32 %s187, %s188
      %p190 = scmp.eq.s32.totalorder %s189, 0
      %s192 = sadd.s32 %s191, 1
      %s193 = scalar_select %p190, %s191, %s192
      %p196 = pneg %p190
      %p197 = scmp.eq.s32.totalorder %s24, 3
      %p198 = por %p196, %p197
      %p199 = scmp.ne.s32.totalorder %s191, %s194
      %p200 = scmp.eq.s32.totalorder %s24, 0
      %p201 = por %p199, %p200
      %p202 = scmp.ne.s32.totalorder %s191, %s194
      %p203 = scmp.eq.s32.totalorder %s29, 3
      %p204 = por %p202, %p203
      %p205 = scmp.ne.s32.totalorder %s194, %s195
      %p206 = scmp.eq.s32.totalorder %s29, 0
      %p207 = por %p205, %p206
      %p208 = scmp.ne.s32.totalorder %s194, %s195
      %p209 = scmp.eq.s32.totalorder %s30, 3
      %p210 = por %p208, %p209
      %p212 = scmp.ne.s32.totalorder %s195, %s211
      %p213 = scmp.eq.s32.totalorder %s30, 0
      %p214 = por %p212, %p213
      %s215 = ssub.s32 %s31, %s43
      %p216 = scmp.eq.s32.totalorder %s215, 0
      %s218 = sadd.s32 %s217, 1
      %s219 = scalar_select %p216, %s217, %s218
      %p222 = pneg %p216
      %p223 = scmp.eq.s32.totalorder %s24, 3
      %p224 = por %p222, %p223
      %p225 = scmp.ne.s32.totalorder %s217, %s220
      %p226 = scmp.eq.s32.totalorder %s24, 0
      %p227 = por %p225, %p226
      %p228 = scmp.ne.s32.totalorder %s217, %s220
      %p229 = scmp.eq.s32.totalorder %s29, 3
      %p230 = por %p228, %p229
      %p231 = scmp.ne.s32.totalorder %s220, %s221
      %p232 = scmp.eq.s32.totalorder %s29, 0
      %p233 = por %p231, %p232
      %p234 = scmp.ne.s32.totalorder %s220, %s221
      %p235 = scmp.eq.s32.totalorder %s30, 3
      %p236 = por %p234, %p235
      %p238 = scmp.ne.s32.totalorder %s221, %s237
      %p239 = scmp.eq.s32.totalorder %s30, 0
      %p240 = por %p238, %p239
      %p241 = scmp.le.s32.totalorder 1, %s24
      %p242 = scmp.lt.s32.totalorder %s24, 5
      %p243 = pnand %p241, %p242
      %p244 = pneg %p243
      // Predicated region
      $region9: #{tpu_custom_call.1} parent=5 // pred_check
        _
      $region10: #{tpu_custom_call.1} parent=5 // pred_check_branch
        %246 = sbr.rel (%p243) target = $region12
      $region11: #{tpu_custom_call.1} parent=5 // pred_region
        %s247 = ssub.s32 %s24, 1
        // Predicated region
        $region13: #{tpu_custom_call.1} parent=11 // pred_check
          %p248 = pneg %p85
        $region14: #{tpu_custom_call.1} parent=11 // pred_check_branch
          %250 = sbr.rel (%p248) target = $region16
        $region15: #{tpu_custom_call.1} parent=11 // pred_region
          %s252 = ssub.s32 128, 128
          %253 = vsyncadd [#allocation8], %s252
          %s254 = sshll.u32 [#allocation7], 4
          %s255 = int_to_ptr.vmem [resolvable:$true] %s254
          %260 = dma.hbm_to_vmem [thread:$0]  %s1, 128, %s255, [#allocation8], 64, 64, 4
        $region16: #{tpu_custom_call.1} parent=11 // pred_fallthru
          _
        // Predicated region
        $region17: #{tpu_custom_call.1} parent=11 // pred_check
          %p261 = pneg %p158
        $region18: #{tpu_custom_call.1} parent=11 // pred_check_branch
          %263 = sbr.rel (%p261) target = $region20
        $region19: #{tpu_custom_call.1} parent=11 // pred_region
          _
        $region20: #{tpu_custom_call.1} parent=11 // pred_fallthru
          _
        // Predicated region
        $region21: #{tpu_custom_call.1} parent=11 // pred_check
          %p264 = pneg %p179
        $region22: #{tpu_custom_call.1} parent=11 // pred_check_branch
          %266 = sbr.rel (%p264) target = $region24
        $region23: #{tpu_custom_call.1} parent=11 // pred_region
          _
        $region24: #{tpu_custom_call.1} parent=11 // pred_fallthru
          _
      $region12: #{tpu_custom_call.1} parent=5 // pred_fallthru
        _
      %p267 = scmp.lt.s32.totalorder %s24, 4
      // Predicated region
      $region25: #{tpu_custom_call.1} parent=5 // pred_check
        %p268 = pneg %p267
      $region26: #{tpu_custom_call.1} parent=5 // pred_check_branch
        %270 = sbr.rel (%p268) target = $region28
      $region27: #{tpu_custom_call.1} parent=5 // pred_region
        // Predicated region
        $region29: #{tpu_custom_call.1} parent=27 // pred_check
          %p271 = pneg %p58
        $region30: #{tpu_custom_call.1} parent=27 // pred_check_branch
          %273 = sbr.rel (%p271) target = $region32
        $region31: #{tpu_custom_call.1} parent=27 // pred_region
          %s274 = sand.u32 %s24, 1
          %s275 = scalar_lea.sflag [#allocation5], %s274
          %s276 = sand.u32 %s48, 1
          %s277 = smul.addr %s276, 32
          %s278 = scalar_lea.vmem [#allocation4], %s277
          %s279 = smul.u32 4, %s32
          %s281 = ssub.s32 512, 512
          %282 = vsyncadd %s275, %s281
          %s283 = smul.addr %s279, 2
          %s284 = sadd.s32 %s31, %s283
          %s285 = smul.addr %s284, 128
          %s286 = scalar_lea.hbm %s0, %s285
          %s287 = sshll.u32 %s278, 4
          %s288 = int_to_ptr.vmem [resolvable:$true] %s287
          %293 = dma.hbm_to_vmem [thread:$0]  %s286, 512, %s288, %s275, 256, 128, 8
        $region32: #{tpu_custom_call.1} parent=27 // pred_fallthru
          _
        // Predicated region
        $region33: #{tpu_custom_call.1} parent=27 // pred_check
          %p294 = pneg %p105
        $region34: #{tpu_custom_call.1} parent=27 // pred_check_branch
          %296 = sbr.rel (%p294) target = $region36
        $region35: #{tpu_custom_call.1} parent=27 // pred_region
          %s297 = sand.u32 %s24, 1
          %s298 = scalar_lea.sflag [#allocation5], %s297
          %s299 = sand.u32 %s95, 1
          %s300 = smul.addr %s299, 8
          %s301 = scalar_lea.vmem [#allocation9], %s300
          %s303 = ssub.s32 128, 128
          %304 = vsyncadd %s298, %s303
          %s305 = smul.addr %s31, 128
          %s306 = scalar_lea.hbm %s2, %s305
          %s308 = sshll.u32 %s301, 4
          %s309 = int_to_ptr.vmem [resolvable:$true] %s308
          %311 = dma.hbm_to_vmem [thread:$0]  %s306, 128, %s309, %s298
        $region36: #{tpu_custom_call.1} parent=27 // pred_fallthru
          _
        // Predicated region
        $region37: #{tpu_custom_call.1} parent=27 // pred_check
          %p312 = pneg %p131
        $region38: #{tpu_custom_call.1} parent=27 // pred_check_branch
          %314 = sbr.rel (%p312) target = $region40
        $region39: #{tpu_custom_call.1} parent=27 // pred_region
          %s315 = sand.u32 %s24, 1
          %s316 = scalar_lea.sflag [#allocation5], %s315
          %s317 = sand.u32 %s121, 1
          %s318 = smul.addr %s317, 8
          %s319 = scalar_lea.vmem [#allocation10], %s318
          %s321 = ssub.s32 128, 128
          %322 = vsyncadd %s316, %s321
          %s323 = smul.addr %s31, 128
          %s324 = scalar_lea.hbm %s3, %s323
          %s326 = sshll.u32 %s319, 4
          %s327 = int_to_ptr.vmem [resolvable:$true] %s326
          %329 = dma.hbm_to_vmem [thread:$0]  %s324, 128, %s327, %s316
        $region40: #{tpu_custom_call.1} parent=27 // pred_fallthru
          _
      $region28: #{tpu_custom_call.1} parent=5 // pred_fallthru
        _
      %p330 = scmp.le.s32.totalorder 1, %s24
      %p331 = scmp.lt.s32.totalorder %s24, 5
      %p332 = pnand %p330, %p331
      %p333 = pneg %p332
      // Predicated region
      $region41: #{tpu_custom_call.1} parent=5 // pred_check
        _
      $region42: #{tpu_custom_call.1} parent=5 // pred_check_branch
        %335 = sbr.rel (%p332) target = $region44
      $region43: #{tpu_custom_call.1} parent=5 // pred_region
        %s336 = ssub.s32 %s24, 1
        %s337 = sand.u32 %s29, 1
        %s338 = scalar_lea.sflag [#allocation5], %s337
        %s339 = sand.u32 %s51, 1
        %s340 = smul.addr %s339, 32
        %s341 = scalar_lea.vmem [#allocation4], %s340
        // Predicated region
        $region45: #{tpu_custom_call.1} parent=43 // pred_check
          %p342 = pneg %p64
        $region46: #{tpu_custom_call.1} parent=43 // pred_check_branch
          %344 = sbr.rel (%p342) target = $region48
        $region47: #{tpu_custom_call.1} parent=43 // pred_region
          %345 = dma.done %s338, 512
        $region48: #{tpu_custom_call.1} parent=43 // pred_fallthru
          _
        // Predicated region
        $region49: #{tpu_custom_call.1} parent=43 // pred_check
          %p346 = pneg %p85
        $region50: #{tpu_custom_call.1} parent=43 // pred_check_branch
          %348 = sbr.rel (%p346) target = $region52
        $region51: #{tpu_custom_call.1} parent=43 // pred_region
          %349 = dma.done [#allocation8], 128
        $region52: #{tpu_custom_call.1} parent=43 // pred_fallthru
          _
        %s350 = sand.u32 %s29, 1
        %s351 = scalar_lea.sflag [#allocation5], %s350
        %s352 = sand.u32 %s98, 1
        %s353 = smul.addr %s352, 8
        %s354 = scalar_lea.vmem [#allocation9], %s353
        // Predicated region
        $region53: #{tpu_custom_call.1} parent=43 // pred_check
          %p355 = pneg %p111
        $region54: #{tpu_custom_call.1} parent=43 // pred_check_branch
          %357 = sbr.rel (%p355) target = $region56
        $region55: #{tpu_custom_call.1} parent=43 // pred_region
          %358 = dma.done %s351, 128
        $region56: #{tpu_custom_call.1} parent=43 // pred_fallthru
          _
        %s359 = sand.u32 %s29, 1
        %s360 = scalar_lea.sflag [#allocation5], %s359
        %s361 = sand.u32 %s124, 1
        %s362 = smul.addr %s361, 8
        %s363 = scalar_lea.vmem [#allocation10], %s362
        // Predicated region
        $region57: #{tpu_custom_call.1} parent=43 // pred_check
          %p364 = pneg %p137
        $region58: #{tpu_custom_call.1} parent=43 // pred_check_branch
          %366 = sbr.rel (%p364) target = $region60
        $region59: #{tpu_custom_call.1} parent=43 // pred_region
          %367 = dma.done %s360, 128
        $region60: #{tpu_custom_call.1} parent=43 // pred_fallthru
          _
        %s368 = sand.u32 %s29, 1
        %s369 = scalar_lea.sflag [#allocation5], %s368
        %s370 = sand.u32 %s51, 1
        %s371 = smul.addr %s370, 32
        %s372 = scalar_lea.vmem [#allocation4], %s371
        %p373 = pneg %p64
        %p374 = pneg %p61
        %p375 = pneg %p85
        %p376 = pneg %p82
        %s377 = sand.u32 %s29, 1
        %s378 = scalar_lea.sflag [#allocation5], %s377
        %s379 = sand.u32 %s98, 1
        %s380 = smul.addr %s379, 8
        %s381 = scalar_lea.vmem [#allocation9], %s380
        %p382 = pneg %p111
        %p383 = pneg %p108
        %s384 = sand.u32 %s29, 1
        %s385 = scalar_lea.sflag [#allocation5], %s384
        %s386 = sand.u32 %s124, 1
        %s387 = smul.addr %s386, 8
        %s388 = scalar_lea.vmem [#allocation10], %s387
        %p389 = pneg %p137
        %p390 = pneg %p134
        %p391 = pneg %p158
        %p392 = pneg %p155
        %p393 = pneg %p179
        %p394 = pneg %p176
        %p395 = pneg %p207
        %p396 = pneg %p204
        %s397 = sand.u32 %s194, 1
        %s398 = scalar_lea.sflag [#allocation6], %s397
        %s399 = sand.u32 %s194, 1
        %s400 = smul.addr %s399, 32
        %s401 = scalar_lea.vmem [#allocation11], %s400
        %p402 = pneg %p233
        %p403 = pneg %p230
        %s404 = sand.u32 %s220, 1
        %s405 = scalar_lea.sflag [#allocation13], %s404
        %s406 = sand.u32 %s220, 1
        %s407 = smul.addr %s406, 8
        %s408 = scalar_lea.vmem [#allocation12], %s407
        %s409 = smul.u32 4, %s34
        %s410 = smul.u32 4, %s34
        %p412 = scmp.eq.s32.totalorder %s34, 0
        // Predicated region
        $region61: #{tpu_custom_call.1} parent=43 // pred_check
          %p413 = pneg %p412
        $region62: #{tpu_custom_call.1} parent=43 // pred_check_branch
          %415 = sbr.rel (%p413) target = $region64
        $region63: #{tpu_custom_call.1} parent=43 // pred_region
          %v416 = vld [vmem:[%s354] sm:$0xff]
          %vm417 = vcmask 130048
          %418 = vst.msk [vmem:[#allocation2] sm:$0xff] %vm417, %v416
          %v419 = vld [vmem:[%s363] sm:$0xff]
          %420 = vst.msk [vmem:[#allocation3] sm:$0xff] %vm417, %v419
        $region64: #{tpu_custom_call.1} parent=43 // pred_fallthru
          _
        %v421 = vld [vmem:[#allocation7] sm:$0xf]
        %v422 = vld [vmem:[#allocation7 + $0x4] sm:$0xf]
        %v423 = vld [vmem:[%s4] sm:$0xf]
        %v424 = vld [vmem:[%s4 + $0x4] sm:$0xf]
        %v425 = vld [vmem:[%s5] sm:$0x1]
        %v427 = vlaneseq
        %v428 = vshrl.u32 %v427, 7
        %v429 = vsub.s32 0, %v428
        %v430 = vrot.slane %v425, %v429
        %v432 = vld [vmem:[#allocation2] sm:$0xff]
        %v433 = vld [vmem:[#allocation3] sm:$0xff]
        %v434 = vld [vmem:[%s341] sm:$0xff]
        %v435 = vpack.c.bf16 %v432, %v432
        %v438 = vunpack.c.l.b16 %v421
        %v439 = vunpack.c.l.b16 %v422
        %v440 = vpack.c.b16 %v439, %v438
        %vm442 = vcmask 130048
        %v444 = vsel %vm442, %v435, 0
        %446 = vmatprep.subr.bf16.mxu0 0
        %447 = vmatpush1.bf16.msra.mxu0 %v440
        %448 = vmatprep.subr.bf16.mxu0 0
        %449 = vmatpush1.bf16.msra.mxu0 0
        %450 = vmatprep.subr.bf16.mxu0 0
        %451 = vmatpush1.bf16.msra.mxu0 0
        %452 = vmatprep.subr.bf16.mxu0 0
        %453 = vmatpush1.bf16.msra.mxu0 0
        %454 = vmatprep.subr.bf16.mxu0 0
        %455 = vmatpush1.bf16.msra.mxu0 0
        %456 = vmatprep.subr.bf16.mxu0 0
        %457 = vmatpush1.bf16.msra.mxu0 0
        %458 = vmatprep.subr.bf16.mxu0 0
        %459 = vmatpush1.bf16.msra.mxu0 0
        %460 = vmatprep.subr.bf16.mxu0 0
        %461 = vmatpush1.bf16.msra.mxu0 0
        %462 = vmatprep.subr.bf16.mxu0 0
        %463 = vmatpush1.bf16.msra.mxu0 0
        %464 = vmatprep.subr.bf16.mxu0 0
        %465 = vmatpush1.bf16.msra.mxu0 0
        %466 = vmatprep.subr.bf16.mxu0 0
        %467 = vmatpush1.bf16.msra.mxu0 0
        %468 = vmatprep.subr.bf16.mxu0 0
        %469 = vmatpush1.bf16.msra.mxu0 0
        %470 = vmatprep.subr.bf16.mxu0 0
        %471 = vmatpush1.bf16.msra.mxu0 0
        %472 = vmatprep.subr.bf16.mxu0 0
        %473 = vmatpush1.bf16.msra.mxu0 0
        %474 = vmatprep.subr.bf16.mxu0 0
        %475 = vmatpush1.bf16.msra.mxu0 0
        %476 = vmatprep.subr.bf16.mxu0 0
        %477 = vmatpush1.bf16.msra.mxu0 0
        %478 = vmatprep.mubr.bf16.mxu0 0
        %479 = vmatmul.mubr.bf16.gmra.mrb[0].mxu0 %v444
        %v480 = vpop.f32.mrb[0].mxu0
        %v481 = vadd.f32 0.0, %v480
        %v482 = vpop.f32.mrb[0].mxu0
        %v483 = vpop.f32.mrb[0].mxu0
        %v484 = vpop.f32.mrb[0].mxu0
        %485 = vdwg.mxu0
        %v486 = vadd.f32 %v434, %v481
        %v487 = vxor.u32 %v486, 2147483648
        %v488 = vmul.f32 %v487, 1.442695
        %v489 = vpow.pop %v488
        %v490 = vadd.f32 %v489, 1.0
        %v491 = vrcp.pop %v490
        %v492 = vmul.f32 1.0, %v491
        %v493 = vtanh.pop %v486
        %495 = vrot.lane.b32.xlu0 %v433, 16
        %v496 = vpop.permute.xlu0 %495
        %v498 = vmul.f32 %v492, %v496
        %500 = vrot.lane.b32.xlu0 %v493, 80
        %v501 = vpop.permute.xlu0 %500
        %v503 = vmul.f32 %v492, %v501
        %505 = vrot.lane.b32.xlu0 %v503, 16
        %v506 = vpop.permute.xlu0 %505
        %v508 = vadd.f32 %v498, %v506
        %v509 = vtanh.pop %v508
        %511 = vrot.lane.b32.xlu0 %v509, 16
        %v512 = vpop.permute.xlu0 %511
        %v514 = vmul.f32 %v492, %v512
        %516 = vrot.lane.b32.xlu0 %v514, 96
        %v517 = vpop.permute.xlu0 %516
        %519 = vst.msk [vmem:[#allocation2] sm:$0xff] %vm442, %v517
        %521 = vrot.lane.b32.xlu0 %v508, 112
        %v522 = vpop.permute.xlu0 %521
        %524 = vst.msk [vmem:[#allocation3] sm:$0xff] %vm442, %v522
        %v525 = vpack.c.bf16 %v514, %v514
        %527 = vrot.lane.b32.xlu0 %v525, 96
        %v528 = vpop.permute.xlu0 %527
        %v531 = vunpack.c.l.b16 %v423
        %v532 = vunpack.c.l.b16 %v424
        %v533 = vpack.c.b16 %v532, %v531
        %v536 = vsel %vm442, %v528, 0
        %538 = vmatprep.subr.bf16.mxu0 0
        %539 = vmatpush1.bf16.msra.mxu0 %v533
        %540 = vmatprep.subr.bf16.mxu0 0
        %541 = vmatpush1.bf16.msra.mxu0 0
        %542 = vmatprep.subr.bf16.mxu0 0
        %543 = vmatpush1.bf16.msra.mxu0 0
        %544 = vmatprep.subr.bf16.mxu0 0
        %545 = vmatpush1.bf16.msra.mxu0 0
        %546 = vmatprep.subr.bf16.mxu0 0
        %547 = vmatpush1.bf16.msra.mxu0 0
        %548 = vmatprep.subr.bf16.mxu0 0
        %549 = vmatpush1.bf16.msra.mxu0 0
        %550 = vmatprep.subr.bf16.mxu0 0
        %551 = vmatpush1.bf16.msra.mxu0 0
        %552 = vmatprep.subr.bf16.mxu0 0
        %553 = vmatpush1.bf16.msra.mxu0 0
        %554 = vmatprep.subr.bf16.mxu0 0
        %555 = vmatpush1.bf16.msra.mxu0 0
        %556 = vmatprep.subr.bf16.mxu0 0
        %557 = vmatpush1.bf16.msra.mxu0 0
        %558 = vmatprep.subr.bf16.mxu0 0
        %559 = vmatpush1.bf16.msra.mxu0 0
        %560 = vmatprep.subr.bf16.mxu0 0
        %561 = vmatpush1.bf16.msra.mxu0 0
        %562 = vmatprep.subr.bf16.mxu0 0
        %563 = vmatpush1.bf16.msra.mxu0 0
        %564 = vmatprep.subr.bf16.mxu0 0
        %565 = vmatpush1.bf16.msra.mxu0 0
        %566 = vmatprep.subr.bf16.mxu0 0
        %567 = vmatpush1.bf16.msra.mxu0 0
        %568 = vmatprep.subr.bf16.mxu0 0
        %569 = vmatpush1.bf16.msra.mxu0 0
        %570 = vmatprep.mubr.bf16.mxu0 0
        %571 = vmatmul.mubr.bf16.gmra.mrb[0].mxu0 %v536
        %v572 = vpop.f32.mrb[0].mxu0
        %v573 = vadd.f32 %v430, %v572
        %v574 = vpop.f32.mrb[0].mxu0
        %v575 = vpop.f32.mrb[0].mxu0
        %v576 = vpop.f32.mrb[0].mxu0
        %577 = vdwg.mxu0
        %vm578 = vcmask 195584
        %579 = vst.msk [vmem:[%s401] sm:$0xff] %vm578, %v573
        %v580 = vld [vmem:[#allocation2] sm:$0xff]
        %v581 = vld [vmem:[#allocation3] sm:$0xff]
        %s582 = scalar_lea.vmem %s341, 8 [#allocation4]
        %v583 = vld [vmem:[%s582] sm:$0xff]
        %v584 = vpack.c.bf16 %v580, %v580
        %v586 = vsel %vm442, %v584, 0
        %588 = vmatprep.subr.bf16.mxu0 0
        %589 = vmatpush1.bf16.msra.mxu0 %v440
        %590 = vmatprep.subr.bf16.mxu0 0
        %591 = vmatpush1.bf16.msra.mxu0 0
        %592 = vmatprep.subr.bf16.mxu0 0
        %593 = vmatpush1.bf16.msra.mxu0 0
        %594 = vmatprep.subr.bf16.mxu0 0
        %595 = vmatpush1.bf16.msra.mxu0 0
        %596 = vmatprep.subr.bf16.mxu0 0
        %597 = vmatpush1.bf16.msra.mxu0 0
        %598 = vmatprep.subr.bf16.mxu0 0
        %599 = vmatpush1.bf16.msra.mxu0 0
        %600 = vmatprep.subr.bf16.mxu0 0
        %601 = vmatpush1.bf16.msra.mxu0 0
        %602 = vmatprep.subr.bf16.mxu0 0
        %603 = vmatpush1.bf16.msra.mxu0 0
        %604 = vmatprep.subr.bf16.mxu0 0
        %605 = vmatpush1.bf16.msra.mxu0 0
        %606 = vmatprep.subr.bf16.mxu0 0
        %607 = vmatpush1.bf16.msra.mxu0 0
        %608 = vmatprep.subr.bf16.mxu0 0
        %609 = vmatpush1.bf16.msra.mxu0 0
        %610 = vmatprep.subr.bf16.mxu0 0
        %611 = vmatpush1.bf16.msra.mxu0 0
        %612 = vmatprep.subr.bf16.mxu0 0
        %613 = vmatpush1.bf16.msra.mxu0 0
        %614 = vmatprep.subr.bf16.mxu0 0
        %615 = vmatpush1.bf16.msra.mxu0 0
        %616 = vmatprep.subr.bf16.mxu0 0
        %617 = vmatpush1.bf16.msra.mxu0 0
        %618 = vmatprep.subr.bf16.mxu0 0
        %619 = vmatpush1.bf16.msra.mxu0 0
        %620 = vmatprep.mubr.bf16.mxu0 0
        %621 = vmatmul.mubr.bf16.gmra.mrb[0].mxu0 %v586
        %v622 = vpop.f32.mrb[0].mxu0
        %v623 = vadd.f32 0.0, %v622
        %v624 = vpop.f32.mrb[0].mxu0
        %v625 = vpop.f32.mrb[0].mxu0
        %v626 = vpop.f32.mrb[0].mxu0
        %627 = vdwg.mxu0
        %v628 = vadd.f32 %v583, %v623
        %v629 = vxor.u32 %v628, 2147483648
        %v630 = vmul.f32 %v629, 1.442695
        %v631 = vpow.pop %v630
        %v632 = vadd.f32 %v631, 1.0
        %v633 = vrcp.pop %v632
        %v634 = vmul.f32 1.0, %v633
        %v635 = vtanh.pop %v628
        %637 = vrot.lane.b32.xlu0 %v581, 16
        %v638 = vpop.permute.xlu0 %637
        %v640 = vmul.f32 %v634, %v638
        %642 = vrot.lane.b32.xlu0 %v635, 80
        %v643 = vpop.permute.xlu0 %642
        %v645 = vmul.f32 %v634, %v643
        %647 = vrot.lane.b32.xlu0 %v645, 16
        %v648 = vpop.permute.xlu0 %647
        %v650 = vadd.f32 %v640, %v648
        %v651 = vtanh.pop %v650
        %653 = vrot.lane.b32.xlu0 %v651, 16
        %v654 = vpop.permute.xlu0 %653
        %v656 = vmul.f32 %v634, %v654
        %658 = vrot.lane.b32.xlu0 %v656, 96
        %v659 = vpop.permute.xlu0 %658
        %661 = vst.msk [vmem:[#allocation2] sm:$0xff] %vm442, %v659
        %663 = vrot.lane.b32.xlu0 %v650, 112
        %v664 = vpop.permute.xlu0 %663
        %666 = vst.msk [vmem:[#allocation3] sm:$0xff] %vm442, %v664
        %v667 = vpack.c.bf16 %v656, %v656
        %669 = vrot.lane.b32.xlu0 %v667, 96
        %v670 = vpop.permute.xlu0 %669
        %v672 = vsel %vm442, %v670, 0
        %674 = vmatprep.subr.bf16.mxu0 0
        %675 = vmatpush1.bf16.msra.mxu0 %v533
        %676 = vmatprep.subr.bf16.mxu0 0
        %677 = vmatpush1.bf16.msra.mxu0 0
        %678 = vmatprep.subr.bf16.mxu0 0
        %679 = vmatpush1.bf16.msra.mxu0 0
        %680 = vmatprep.subr.bf16.mxu0 0
        %681 = vmatpush1.bf16.msra.mxu0 0
        %682 = vmatprep.subr.bf16.mxu0 0
        %683 = vmatpush1.bf16.msra.mxu0 0
        %684 = vmatprep.subr.bf16.mxu0 0
        %685 = vmatpush1.bf16.msra.mxu0 0
        %686 = vmatprep.subr.bf16.mxu0 0
        %687 = vmatpush1.bf16.msra.mxu0 0
        %688 = vmatprep.subr.bf16.mxu0 0
        %689 = vmatpush1.bf16.msra.mxu0 0
        %690 = vmatprep.subr.bf16.mxu0 0
        %691 = vmatpush1.bf16.msra.mxu0 0
        %692 = vmatprep.subr.bf16.mxu0 0
        %693 = vmatpush1.bf16.msra.mxu0 0
        %694 = vmatprep.subr.bf16.mxu0 0
        %695 = vmatpush1.bf16.msra.mxu0 0
        %696 = vmatprep.subr.bf16.mxu0 0
        %697 = vmatpush1.bf16.msra.mxu0 0
        %698 = vmatprep.subr.bf16.mxu0 0
        %699 = vmatpush1.bf16.msra.mxu0 0
        %700 = vmatprep.subr.bf16.mxu0 0
        %701 = vmatpush1.bf16.msra.mxu0 0
        %702 = vmatprep.subr.bf16.mxu0 0
        %703 = vmatpush1.bf16.msra.mxu0 0
        %704 = vmatprep.subr.bf16.mxu0 0
        %705 = vmatpush1.bf16.msra.mxu0 0
        %706 = vmatprep.mubr.bf16.mxu0 0
        %707 = vmatmul.mubr.bf16.gmra.mrb[0].mxu0 %v672
        %v708 = vpop.f32.mrb[0].mxu0
        %v709 = vadd.f32 %v430, %v708
        %v710 = vpop.f32.mrb[0].mxu0
        %v711 = vpop.f32.mrb[0].mxu0
        %v712 = vpop.f32.mrb[0].mxu0
        %713 = vdwg.mxu0
        %s714 = scalar_lea.vmem %s401, 8 [#allocation11]
        %715 = vst.msk [vmem:[%s714] sm:$0xff] %vm578, %v709
        %v716 = vld [vmem:[#allocation2] sm:$0xff]
        %v717 = vld [vmem:[#allocation3] sm:$0xff]
        %s718 = scalar_lea.vmem %s341, 16 [#allocation4]
        %v719 = vld [vmem:[%s718] sm:$0xff]
        %v720 = vpack.c.bf16 %v716, %v716
        %v722 = vsel %vm442, %v720, 0
        %724 = vmatprep.subr.bf16.mxu0 0
        %725 = vmatpush1.bf16.msra.mxu0 %v440
        %726 = vmatprep.subr.bf16.mxu0 0
        %727 = vmatpush1.bf16.msra.mxu0 0
        %728 = vmatprep.subr.bf16.mxu0 0
        %729 = vmatpush1.bf16.msra.mxu0 0
        %730 = vmatprep.subr.bf16.mxu0 0
        %731 = vmatpush1.bf16.msra.mxu0 0
        %732 = vmatprep.subr.bf16.mxu0 0
        %733 = vmatpush1.bf16.msra.mxu0 0
        %734 = vmatprep.subr.bf16.mxu0 0
        %735 = vmatpush1.bf16.msra.mxu0 0
        %736 = vmatprep.subr.bf16.mxu0 0
        %737 = vmatpush1.bf16.msra.mxu0 0
        %738 = vmatprep.subr.bf16.mxu0 0
        %739 = vmatpush1.bf16.msra.mxu0 0
        %740 = vmatprep.subr.bf16.mxu0 0
        %741 = vmatpush1.bf16.msra.mxu0 0
        %742 = vmatprep.subr.bf16.mxu0 0
        %743 = vmatpush1.bf16.msra.mxu0 0
        %744 = vmatprep.subr.bf16.mxu0 0
        %745 = vmatpush1.bf16.msra.mxu0 0
        %746 = vmatprep.subr.bf16.mxu0 0
        %747 = vmatpush1.bf16.msra.mxu0 0
        %748 = vmatprep.subr.bf16.mxu0 0
        %749 = vmatpush1.bf16.msra.mxu0 0
        %750 = vmatprep.subr.bf16.mxu0 0
        %751 = vmatpush1.bf16.msra.mxu0 0
        %752 = vmatprep.subr.bf16.mxu0 0
        %753 = vmatpush1.bf16.msra.mxu0 0
        %754 = vmatprep.subr.bf16.mxu0 0
        %755 = vmatpush1.bf16.msra.mxu0 0
        %756 = vmatprep.mubr.bf16.mxu0 0
        %757 = vmatmul.mubr.bf16.gmra.mrb[0].mxu0 %v722
        %v758 = vpop.f32.mrb[0].mxu0
        %v759 = vadd.f32 0.0, %v758
        %v760 = vpop.f32.mrb[0].mxu0
        %v761 = vpop.f32.mrb[0].mxu0
        %v762 = vpop.f32.mrb[0].mxu0
        %763 = vdwg.mxu0
        %v764 = vadd.f32 %v719, %v759
        %v765 = vxor.u32 %v764, 2147483648
        %v766 = vmul.f32 %v765, 1.442695
        %v767 = vpow.pop %v766
        %v768 = vadd.f32 %v767, 1.0
        %v769 = vrcp.pop %v768
        %v770 = vmul.f32 1.0, %v769
        %v771 = vtanh.pop %v764
        %773 = vrot.lane.b32.xlu0 %v717, 16
        %v774 = vpop.permute.xlu0 %773
        %v776 = vmul.f32 %v770, %v774
        %778 = vrot.lane.b32.xlu0 %v771, 80
        %v779 = vpop.permute.xlu0 %778
        %v781 = vmul.f32 %v770, %v779
        %783 = vrot.lane.b32.xlu0 %v781, 16
        %v784 = vpop.permute.xlu0 %783
        %v786 = vadd.f32 %v776, %v784
        %v787 = vtanh.pop %v786
        %789 = vrot.lane.b32.xlu0 %v787, 16
        %v790 = vpop.permute.xlu0 %789
        %v792 = vmul.f32 %v770, %v790
        %794 = vrot.lane.b32.xlu0 %v792, 96
        %v795 = vpop.permute.xlu0 %794
        %797 = vst.msk [vmem:[#allocation2] sm:$0xff] %vm442, %v795
        %799 = vrot.lane.b32.xlu0 %v786, 112
        %v800 = vpop.permute.xlu0 %799
        %802 = vst.msk [vmem:[#allocation3] sm:$0xff] %vm442, %v800
        %v803 = vpack.c.bf16 %v792, %v792
        %805 = vrot.lane.b32.xlu0 %v803, 96
        %v806 = vpop.permute.xlu0 %805
        %v808 = vsel %vm442, %v806, 0
        %810 = vmatprep.subr.bf16.mxu0 0
        %811 = vmatpush1.bf16.msra.mxu0 %v533
        %812 = vmatprep.subr.bf16.mxu0 0
        %813 = vmatpush1.bf16.msra.mxu0 0
        %814 = vmatprep.subr.bf16.mxu0 0
        %815 = vmatpush1.bf16.msra.mxu0 0
        %816 = vmatprep.subr.bf16.mxu0 0
        %817 = vmatpush1.bf16.msra.mxu0 0
        %818 = vmatprep.subr.bf16.mxu0 0
        %819 = vmatpush1.bf16.msra.mxu0 0
        %820 = vmatprep.subr.bf16.mxu0 0
        %821 = vmatpush1.bf16.msra.mxu0 0
        %822 = vmatprep.subr.bf16.mxu0 0
        %823 = vmatpush1.bf16.msra.mxu0 0
        %824 = vmatprep.subr.bf16.mxu0 0
        %825 = vmatpush1.bf16.msra.mxu0 0
        %826 = vmatprep.subr.bf16.mxu0 0
        %827 = vmatpush1.bf16.msra.mxu0 0
        %828 = vmatprep.subr.bf16.mxu0 0
        %829 = vmatpush1.bf16.msra.mxu0 0
        %830 = vmatprep.subr.bf16.mxu0 0
        %831 = vmatpush1.bf16.msra.mxu0 0
        %832 = vmatprep.subr.bf16.mxu0 0
        %833 = vmatpush1.bf16.msra.mxu0 0
        %834 = vmatprep.subr.bf16.mxu0 0
        %835 = vmatpush1.bf16.msra.mxu0 0
        %836 = vmatprep.subr.bf16.mxu0 0
        %837 = vmatpush1.bf16.msra.mxu0 0
        %838 = vmatprep.subr.bf16.mxu0 0
        %839 = vmatpush1.bf16.msra.mxu0 0
        %840 = vmatprep.subr.bf16.mxu0 0
        %841 = vmatpush1.bf16.msra.mxu0 0
        %842 = vmatprep.mubr.bf16.mxu0 0
        %843 = vmatmul.mubr.bf16.gmra.mrb[0].mxu0 %v808
        %v844 = vpop.f32.mrb[0].mxu0
        %v845 = vadd.f32 %v430, %v844
        %v846 = vpop.f32.mrb[0].mxu0
        %v847 = vpop.f32.mrb[0].mxu0
        %v848 = vpop.f32.mrb[0].mxu0
        %849 = vdwg.mxu0
        %s850 = scalar_lea.vmem %s401, 16 [#allocation11]
        %851 = vst.msk [vmem:[%s850] sm:$0xff] %vm578, %v845
        %v852 = vld [vmem:[#allocation2] sm:$0xff]
        %v853 = vld [vmem:[#allocation3] sm:$0xff]
        %s854 = scalar_lea.vmem %s341, 24 [#allocation4]
        %v855 = vld [vmem:[%s854] sm:$0xff]
        %v856 = vpack.c.bf16 %v852, %v852
        %v858 = vsel %vm442, %v856, 0
        %860 = vmatprep.subr.bf16.mxu0 0
        %861 = vmatpush1.bf16.msra.mxu0 %v440
        %862 = vmatprep.subr.bf16.mxu0 0
        %863 = vmatpush1.bf16.msra.mxu0 0
        %864 = vmatprep.subr.bf16.mxu0 0
        %865 = vmatpush1.bf16.msra.mxu0 0
        %866 = vmatprep.subr.bf16.mxu0 0
        %867 = vmatpush1.bf16.msra.mxu0 0
        %868 = vmatprep.subr.bf16.mxu0 0
        %869 = vmatpush1.bf16.msra.mxu0 0
        %870 = vmatprep.subr.bf16.mxu0 0
        %871 = vmatpush1.bf16.msra.mxu0 0
        %872 = vmatprep.subr.bf16.mxu0 0
        %873 = vmatpush1.bf16.msra.mxu0 0
        %874 = vmatprep.subr.bf16.mxu0 0
        %875 = vmatpush1.bf16.msra.mxu0 0
        %876 = vmatprep.subr.bf16.mxu0 0
        %877 = vmatpush1.bf16.msra.mxu0 0
        %878 = vmatprep.subr.bf16.mxu0 0
        %879 = vmatpush1.bf16.msra.mxu0 0
        %880 = vmatprep.subr.bf16.mxu0 0
        %881 = vmatpush1.bf16.msra.mxu0 0
        %882 = vmatprep.subr.bf16.mxu0 0
        %883 = vmatpush1.bf16.msra.mxu0 0
        %884 = vmatprep.subr.bf16.mxu0 0
        %885 = vmatpush1.bf16.msra.mxu0 0
        %886 = vmatprep.subr.bf16.mxu0 0
        %887 = vmatpush1.bf16.msra.mxu0 0
        %888 = vmatprep.subr.bf16.mxu0 0
        %889 = vmatpush1.bf16.msra.mxu0 0
        %890 = vmatprep.subr.bf16.mxu0 0
        %891 = vmatpush1.bf16.msra.mxu0 0
        %892 = vmatprep.mubr.bf16.mxu0 0
        %893 = vmatmul.mubr.bf16.gmra.mrb[0].mxu0 %v858
        %v894 = vpop.f32.mrb[0].mxu0
        %v895 = vadd.f32 0.0, %v894
        %v896 = vpop.f32.mrb[0].mxu0
        %v897 = vpop.f32.mrb[0].mxu0
        %v898 = vpop.f32.mrb[0].mxu0
        %899 = vdwg.mxu0
        %v900 = vadd.f32 %v855, %v895
        %v901 = vxor.u32 %v900, 2147483648
        %v902 = vmul.f32 %v901, 1.442695
        %v903 = vpow.pop %v902
        %v904 = vadd.f32 %v903, 1.0
        %v905 = vrcp.pop %v904
        %v906 = vmul.f32 1.0, %v905
        %v907 = vtanh.pop %v900
        %909 = vrot.lane.b32.xlu0 %v853, 16
        %v910 = vpop.permute.xlu0 %909
        %v912 = vmul.f32 %v906, %v910
        %914 = vrot.lane.b32.xlu0 %v907, 80
        %v915 = vpop.permute.xlu0 %914
        %v917 = vmul.f32 %v906, %v915
        %919 = vrot.lane.b32.xlu0 %v917, 16
        %v920 = vpop.permute.xlu0 %919
        %v922 = vadd.f32 %v912, %v920
        %v923 = vtanh.pop %v922
        %925 = vrot.lane.b32.xlu0 %v923, 16
        %v926 = vpop.permute.xlu0 %925
        %v928 = vmul.f32 %v906, %v926
        %930 = vrot.lane.b32.xlu0 %v928, 96
        %v931 = vpop.permute.xlu0 %930
        %933 = vst.msk [vmem:[#allocation2] sm:$0xff] %vm442, %v931
        %935 = vrot.lane.b32.xlu0 %v922, 112
        %v936 = vpop.permute.xlu0 %935
        %938 = vst.msk [vmem:[#allocation3] sm:$0xff] %vm442, %v936
        %v939 = vpack.c.bf16 %v928, %v928
        %941 = vrot.lane.b32.xlu0 %v939, 96
        %v942 = vpop.permute.xlu0 %941
        %v944 = vsel %vm442, %v942, 0
        %946 = vmatprep.subr.bf16.mxu0 0
        %947 = vmatpush1.bf16.msra.mxu0 %v533
        %948 = vmatprep.subr.bf16.mxu0 0
        %949 = vmatpush1.bf16.msra.mxu0 0
        %950 = vmatprep.subr.bf16.mxu0 0
        %951 = vmatpush1.bf16.msra.mxu0 0
        %952 = vmatprep.subr.bf16.mxu0 0
        %953 = vmatpush1.bf16.msra.mxu0 0
        %954 = vmatprep.subr.bf16.mxu0 0
        %955 = vmatpush1.bf16.msra.mxu0 0
        %956 = vmatprep.subr.bf16.mxu0 0
        %957 = vmatpush1.bf16.msra.mxu0 0
        %958 = vmatprep.subr.bf16.mxu0 0
        %959 = vmatpush1.bf16.msra.mxu0 0
        %960 = vmatprep.subr.bf16.mxu0 0
        %961 = vmatpush1.bf16.msra.mxu0 0
        %962 = vmatprep.subr.bf16.mxu0 0
        %963 = vmatpush1.bf16.msra.mxu0 0
        %964 = vmatprep.subr.bf16.mxu0 0
        %965 = vmatpush1.bf16.msra.mxu0 0
        %966 = vmatprep.subr.bf16.mxu0 0
        %967 = vmatpush1.bf16.msra.mxu0 0
        %968 = vmatprep.subr.bf16.mxu0 0
        %969 = vmatpush1.bf16.msra.mxu0 0
        %970 = vmatprep.subr.bf16.mxu0 0
        %971 = vmatpush1.bf16.msra.mxu0 0
        %972 = vmatprep.subr.bf16.mxu0 0
        %973 = vmatpush1.bf16.msra.mxu0 0
        %974 = vmatprep.subr.bf16.mxu0 0
        %975 = vmatpush1.bf16.msra.mxu0 0
        %976 = vmatprep.subr.bf16.mxu0 0
        %977 = vmatpush1.bf16.msra.mxu0 0
        %978 = vmatprep.mubr.bf16.mxu0 0
        %979 = vmatmul.mubr.bf16.gmra.mrb[0].mxu0 %v944
        %v980 = vpop.f32.mrb[0].mxu0
        %v981 = vadd.f32 %v430, %v980
        %v982 = vpop.f32.mrb[0].mxu0
        %v983 = vpop.f32.mrb[0].mxu0
        %v984 = vpop.f32.mrb[0].mxu0
        %985 = vdwg.mxu0
        %s986 = scalar_lea.vmem %s401, 24 [#allocation11]
        %987 = vst.msk [vmem:[%s986] sm:$0xff] %vm578, %v981
        %p988 = scmp.eq.s32.totalorder %s34, 1
        // Predicated region
        $region65: #{tpu_custom_call.1} parent=43 // pred_check
          %p989 = pneg %p988
        $region66: #{tpu_custom_call.1} parent=43 // pred_check_branch
          %991 = sbr.rel (%p989) target = $region68
        $region67: #{tpu_custom_call.1} parent=43 // pred_region
          %v992 = vld [vmem:[#allocation2] sm:$0xff]
          %993 = vst.msk [vmem:[%s408] sm:$0xff] %vm442, %v992
          %v994 = vld [vmem:[#allocation3] sm:$0xff]
          %996 = vrot.lane.b32.xlu0 %v994, 16
          %v997 = vpop.permute.xlu0 %996
          %vm999 = vcmask 261248
          %1000 = vst.msk [vmem:[%s408] sm:$0xff] %vm999, %v997
        $region68: #{tpu_custom_call.1} parent=43 // pred_fallthru
          _
        %s1001 = sand.u32 %s194, 1
        %s1002 = scalar_lea.sflag [#allocation6], %s1001
        %s1003 = sand.u32 %s194, 1
        %s1004 = smul.addr %s1003, 32
        %s1005 = scalar_lea.vmem [#allocation11], %s1004
        %s1006 = sand.u32 %s220, 1
        %s1007 = scalar_lea.sflag [#allocation13], %s1006
        %s1008 = sand.u32 %s220, 1
        %s1009 = smul.addr %s1008, 8
        %s1010 = scalar_lea.vmem [#allocation12], %s1009
        // Predicated region
        $region69: #{tpu_custom_call.1} parent=43 // pred_check
          %p1011 = pneg %p204
        $region70: #{tpu_custom_call.1} parent=43 // pred_check_branch
          %1013 = sbr.rel (%p1011) target = $region72
        $region71: #{tpu_custom_call.1} parent=43 // pred_region
          %s1014 = smul.u32 4, %s34
          %s1016 = ssub.s32 512, 512
          %1017 = vsyncadd %s1002, %s1016
          %s1018 = smul.addr %s1014, 2
          %s1019 = sadd.s32 %s33, %s1018
          %s1020 = smul.addr %s1019, 128
          %s1021 = scalar_lea.hbm %s6, %s1020
          %s1022 = sshll.u32 %s1005, 4
          %s1023 = int_to_ptr.vmem [resolvable:$true] %s1022
          %1028 = dma.vmem_to_hbm [thread:$0]  %s1023, 512, %s1021, %s1002, 128, 256, 8
        $region72: #{tpu_custom_call.1} parent=43 // pred_fallthru
          _
        // Predicated region
        $region73: #{tpu_custom_call.1} parent=43 // pred_check
          %p1029 = pneg %p230
        $region74: #{tpu_custom_call.1} parent=43 // pred_check_branch
          %1031 = sbr.rel (%p1029) target = $region76
        $region75: #{tpu_custom_call.1} parent=43 // pred_region
          %s1033 = ssub.s32 128, 128
          %1034 = vsyncadd %s1007, %s1033
          %s1035 = smul.addr %s33, 128
          %s1036 = scalar_lea.hbm %s7, %s1035
          %s1038 = sshll.u32 %s1010, 4
          %s1039 = int_to_ptr.vmem [resolvable:$true] %s1038
          %1041 = dma.vmem_to_hbm [thread:$0]  %s1039, 128, %s1036, %s1007
        $region76: #{tpu_custom_call.1} parent=43 // pred_fallthru
          _
      $region44: #{tpu_custom_call.1} parent=5 // pred_fallthru
        _
      %p1042 = scmp.le.s32.totalorder 2, %s24
      // Predicated region
      $region77: #{tpu_custom_call.1} parent=5 // pred_check
        %p1043 = pneg %p1042
      $region78: #{tpu_custom_call.1} parent=5 // pred_check_branch
        %1045 = sbr.rel (%p1043) target = $region80
      $region79: #{tpu_custom_call.1} parent=5 // pred_region
        %s1046 = ssub.s32 %s24, 2
        // Predicated region
        $region81: #{tpu_custom_call.1} parent=79 // pred_check
          %p1047 = pneg %p210
        $region82: #{tpu_custom_call.1} parent=79 // pred_check_branch
          %1049 = sbr.rel (%p1047) target = $region84
        $region83: #{tpu_custom_call.1} parent=79 // pred_region
          %s1050 = sand.u32 %s195, 1
          %s1051 = scalar_lea.sflag [#allocation6], %s1050
          %s1052 = sand.u32 %s195, 1
          %s1053 = smul.addr %s1052, 32
          %s1054 = scalar_lea.vmem [#allocation11], %s1053
          %1055 = dma.done %s1051, 512
        $region84: #{tpu_custom_call.1} parent=79 // pred_fallthru
          _
        // Predicated region
        $region85: #{tpu_custom_call.1} parent=79 // pred_check
          %p1056 = pneg %p236
        $region86: #{tpu_custom_call.1} parent=79 // pred_check_branch
          %1058 = sbr.rel (%p1056) target = $region88
        $region87: #{tpu_custom_call.1} parent=79 // pred_region
          %s1059 = sand.u32 %s221, 1
          %s1060 = scalar_lea.sflag [#allocation13], %s1059
          %s1061 = sand.u32 %s221, 1
          %s1062 = smul.addr %s1061, 8
          %s1063 = scalar_lea.vmem [#allocation12], %s1062
          %1064 = dma.done %s1060, 128
        $region88: #{tpu_custom_call.1} parent=79 // pred_fallthru
          _
      $region80: #{tpu_custom_call.1} parent=5 // pred_fallthru
        _
    $region6: #{tpu_custom_call.1} parent=1 // loop_footer
      %s28 = sadd.s32 1, %s24
    $region7: #{tpu_custom_call.1} parent=1 // loop_footer_branch
      %23 = sbr.rel target = $region3
    $region8: #{tpu_custom_call.1} parent=1 // loop_exit
      _
    %1065 = vsyncpa [#allocation5], 1
    %s1066 = scalar_lea.sflag [#allocation5], 1
    %1067 = vsyncpa %s1066, 1
    %1068 = vsyncpa [#allocation8], 1
    %1069 = vsyncpa [#allocation6], 1
    %s1070 = scalar_lea.sflag [#allocation6], 1
    %1071 = vsyncpa %s1070, 1
    %1072 = vsyncpa [#allocation13], 1
    %s1073 = scalar_lea.sflag [#allocation13], 1
    %1074 = vsyncpa %s1073, 1

</llo_original>
